<compile_context>
chip_gen: v7x
topology: tpu7x:2x2x1
jax: 0.10.0
libtpu: 0.0.40
codegen_flags: <defaults>
</compile_context>

<pallas_src>
import jax
import jax.numpy as jnp
from jax import lax
from jax.experimental import pallas as pl
from jax.experimental.pallas import tpu as pltpu


def rnn_net_kernel(x_ref, h0_ref, wih_ref, whh_ref, b_ref, wout_ref, bout_ref,
                   out_ref, hN_ref):
    """Single-layer tanh RNN + Linear + Sigmoid for one batch block.

    x_ref   : (Bt, T, I)      batch-first input block
    h0_ref  : (Bt, H)         initial hidden state
    wih_ref : (I, H)          input->hidden weight (transposed vs torch)
    whh_ref : (H, H)          hidden->hidden weight (transposed vs torch)
    b_ref   : (1, H)          b_ih + b_hh combined
    wout_ref: (H, O_pad)      hidden2tag weight, zero-padded to a lane multiple
    bout_ref: (1, O_pad)      hidden2tag bias, zero-padded
    out_ref : (Bt, T, O_pad)  sigmoid(tag_space), lane-dense
    hN_ref  : (Bt, H)         final hidden state
    """
    T = x_ref.shape[1]

    # Weights/biases loaded once per grid step, reused across all T iterations.
    wih = wih_ref[...]
    whh = whh_ref[...]
    b = b_ref[...]
    wout = wout_ref[...]
    bout = bout_ref[...]

    h = h0_ref[...]                         # (Bt, H), f32

    # Static unroll over the (small, fixed) sequence length: one basic block,
    # so every op not on the h-dependency chain overlaps with it.
    for t in range(T):
        # Off-chain: input projection for step t (pure 2-D MXU op).
        pre_t = jnp.dot(x_ref[:, t, :], wih,
                        preferred_element_type=jnp.float32) + b
        # Serial chain: only (Bt,H)x(H,H) matmul + tanh depend on h_{t-1}.
        h = jnp.tanh(pre_t + jnp.dot(h, whh,
                                     preferred_element_type=jnp.float32))
        # Off-chain: hidden2tag + sigmoid + lane-dense store for step t.
        tag_t = jnp.dot(h, wout, preferred_element_type=jnp.float32) + bout
        out_ref[:, t, :] = jax.nn.sigmoid(tag_t).astype(out_ref.dtype)

    hN_ref[...] = h
    # TODO(synk): train-mode Dropout(p=0.2), LogSoftmax (use_softmax=True),
    # LSTM/GRU units and n_layers>1 are not exercised by the default eval
    # forward path; omitted.
    # TODO(synk): for long sequences, stream T via a grid axis ("arbitrary")
    # with h carried in persistent scratch instead of full unroll.
    # TODO(synk): on v6e/v7x cast matmul operands to bf16 (f32 accumulation)
    # for the native MXU path; kept f32 to hold the 1e-5 self-test tolerance.


def _pick_block_b(B, T, I, O_pad, H, budget_bytes=24 << 20):
    """Largest sublane-aligned batch tile that divides B and fits the VMEM budget."""
    def fits(bb):
        vmem = 4 * (2 * bb * T * I         # x block, double-buffered
                    + 2 * bb * T * O_pad   # out block, double-buffered
                    + 4 * bb * H)          # h0 in + hN out, double-buffered
        return vmem <= budget_bytes
    for cand in (256, 128, 64, 32, 16, 8):
        if B % cand == 0 and fits(cand):
            return cand
    return B                               # small / odd batch: single block


def rnn_net_forward(x, h0, params):
    """x: (B, T, I) batch-first (PyTorch convention); h0: (n_layers=1, B, H)."""
    B, T, I = x.shape
    H = params["w_hh"].shape[0]
    O = params["w_out"].shape[1]

    LANE = 128
    O_pad = ((O + LANE - 1) // LANE) * LANE          # lane-dense output width

    # Zero-pad hidden2tag so every kernel store is a full-lane vst; padded
    # columns produce sigmoid(0)=0.5 and are sliced off below.
    w_out_p = jnp.zeros((H, O_pad), jnp.float32).at[:, :O].set(params["w_out"])
    b_out_p = jnp.zeros((1, O_pad), jnp.float32).at[:, :O].set(params["b_out"])

    block_b = _pick_block_b(B, T, I, O_pad, H)
    n_blocks = B // block_b

    out_pad, hN = pl.pallas_call(
        rnn_net_kernel,
        grid=(n_blocks,),
        in_specs=[
            pl.BlockSpec((block_b, T, I), lambda b: (b, 0, 0)),      # x
            pl.BlockSpec((block_b, H), lambda b: (b, 0)),            # h0
            pl.BlockSpec((I, H), lambda b: (0, 0)),                  # W_ih^T
            pl.BlockSpec((H, H), lambda b: (0, 0)),                  # W_hh^T
            pl.BlockSpec((1, H), lambda b: (0, 0)),                  # b_ih + b_hh
            pl.BlockSpec((H, O_pad), lambda b: (0, 0)),              # W_out^T (padded)
            pl.BlockSpec((1, O_pad), lambda b: (0, 0)),              # b_out (padded)
        ],
        out_specs=(
            pl.BlockSpec((block_b, T, O_pad), lambda b: (b, 0, 0)),  # sigmoid(tag)
            pl.BlockSpec((block_b, H), lambda b: (b, 0)),            # h_T
        ),
        out_shape=(
            jax.ShapeDtypeStruct((B, T, O_pad), jnp.float32),
            jax.ShapeDtypeStruct((B, H), jnp.float32),
        ),
        compiler_params=pltpu.CompilerParams(
            dimension_semantics=("parallel",)),          # batch blocks across TCs
    )(x, h0[0], params["w_ih"], params["w_hh"], params["b"], w_out_p, b_out_p)

    tag_scores = out_pad[..., :O]        # drop lane padding
    rnn_hidden = hN[None, :, :]          # (n_layers=1, B, H)
    return tag_scores, rnn_hidden


def make_params(key, input_size, hidden_size, output_size):
    """Deterministic init mimicking torch's U(-1/sqrt(H), 1/sqrt(H))."""
    ks = jax.random.split(key, 6)
    bound = 1.0 / jnp.sqrt(hidden_size)
    u = lambda k, shape: jax.random.uniform(k, shape, jnp.float32, -bound, bound)
    return {
        "w_ih": u(ks[0], (input_size, hidden_size)),        # W_ih^T
        "w_hh": u(ks[1], (hidden_size, hidden_size)),       # W_hh^T
        "b":    u(ks[2], (1, hidden_size)) + u(ks[3], (1, hidden_size)),  # b_ih+b_hh
        "w_out": u(ks[4], (hidden_size, output_size)),      # hidden2tag W^T
        "b_out": u(ks[5], (1, output_size)),
    }


def rnn_net_reference(x, h0, params):
    """Pure-JAX reference of the same forward pass (for correctness check)."""
    def step(h, x_t):
        h_new = jnp.tanh(x_t @ params["w_ih"] + h @ params["w_hh"] + params["b"])
        return h_new, h_new
    hN, hs = lax.scan(step, h0[0], jnp.transpose(x, (1, 0, 2)))
    rnn_out = jnp.transpose(hs, (1, 0, 2))                    # (B, T, H)
    tag = rnn_out @ params["w_out"] + params["b_out"]
    return jax.nn.sigmoid(tag), hN[None]


if __name__ == "__main__":
    B, T, I, H, O = 2, 8, 16, 32, 8
    key = jax.random.PRNGKey(0)
    k_x, k_p = jax.random.split(key)

    x = jax.random.normal(k_x, (B, T, I), jnp.float32)
    h0 = jnp.zeros((1, B, H), jnp.float32)                    # init_hidden(batch_size)
    params = make_params(k_p, I, H, O)

    tag_scores, rnn_hidden = rnn_net_forward(x, h0, params)
    jax.block_until_ready((tag_scores, rnn_hidden))

    ref_scores, ref_hidden = rnn_net_reference(x, h0, params)
    assert tag_scores.shape == (B, T, O)
    assert rnn_hidden.shape == (1, B, H)
    assert jnp.allclose(tag_scores, ref_scores, atol=1e-5, rtol=1e-5)
    assert jnp.allclose(rnn_hidden, ref_hidden, atol=1e-5, rtol=1e-5)

    print("KERNEL_OK")
</pallas_src>

<mosaic_0001>
module attributes {stable_mosaic.version = 11 : i64} {
  func.func @rnn_net_kernel(%arg0: i32, %arg1: memref<2x8x16xf32, #tpu.memory_space<vmem>>, %arg2: memref<2x32xf32, #tpu.memory_space<vmem>>, %arg3: memref<16x32xf32, #tpu.memory_space<vmem>>, %arg4: memref<32x32xf32, #tpu.memory_space<vmem>>, %arg5: memref<1x32xf32, #tpu.memory_space<vmem>>, %arg6: memref<32x128xf32, #tpu.memory_space<vmem>>, %arg7: memref<1x128xf32, #tpu.memory_space<vmem>>, %arg8: memref<2x8x128xf32, #tpu.memory_space<vmem>>, %arg9: memref<2x32xf32, #tpu.memory_space<vmem>>) attributes {dimension_semantics = [#tpu.dimension_semantics<parallel>], iteration_bounds = array<i64: 1>, scalar_prefetch = 0 : i64, scratch_operands = 0 : i64, tpu.core_type = #tpu.core_type<tc>, window_params = [{transform_indices = @transform_0, window_bounds = array<i64: 2, 8, 16>}, {transform_indices = @transform_1, window_bounds = array<i64: 2, 32>}, {pipeline_mode = #tpu.pipeline_mode<synchronous>, transform_indices = @transform_2, window_bounds = array<i64: 16, 32>}, {pipeline_mode = #tpu.pipeline_mode<synchronous>, transform_indices = @transform_3, window_bounds = array<i64: 32, 32>}, {pipeline_mode = #tpu.pipeline_mode<synchronous>, transform_indices = @transform_4, window_bounds = array<i64: 1, 32>}, {pipeline_mode = #tpu.pipeline_mode<synchronous>, transform_indices = @transform_5, window_bounds = array<i64: 32, 128>}, {pipeline_mode = #tpu.pipeline_mode<synchronous>, transform_indices = @transform_6, window_bounds = array<i64: 1, 128>}, {transform_indices = @transform_7, window_bounds = array<i64: 2, 8, 128>}, {transform_indices = @transform_8, window_bounds = array<i64: 2, 32>}]} {
    %c0 = arith.constant 0 : index
    %c0_0 = arith.constant 0 : index
    %0 = vector.load %arg3[%c0, %c0_0] : memref<16x32xf32, #tpu.memory_space<vmem>>, vector<16x32xf32>
    %c0_1 = arith.constant 0 : index
    %c0_2 = arith.constant 0 : index
    %1 = vector.load %arg4[%c0_1, %c0_2] : memref<32x32xf32, #tpu.memory_space<vmem>>, vector<32x32xf32>
    %c0_3 = arith.constant 0 : index
    %c0_4 = arith.constant 0 : index
    %2 = vector.load %arg5[%c0_3, %c0_4] : memref<1x32xf32, #tpu.memory_space<vmem>>, vector<1x32xf32>
    %c0_5 = arith.constant 0 : index
    %c0_6 = arith.constant 0 : index
    %3 = vector.load %arg6[%c0_5, %c0_6] : memref<32x128xf32, #tpu.memory_space<vmem>>, vector<32x128xf32>
    %c0_7 = arith.constant 0 : index
    %c0_8 = arith.constant 0 : index
    %4 = vector.load %arg7[%c0_7, %c0_8] : memref<1x128xf32, #tpu.memory_space<vmem>>, vector<1x128xf32>
    %c0_9 = arith.constant 0 : index
    %c0_10 = arith.constant 0 : index
    %5 = vector.load %arg2[%c0_9, %c0_10] : memref<2x32xf32, #tpu.memory_space<vmem>>, vector<2x32xf32>
    %c0_11 = arith.constant 0 : index
    %c0_12 = arith.constant 0 : index
    %c0_13 = arith.constant 0 : index
    %6 = vector.load %arg1[%c0_11, %c0_12, %c0_13] : memref<2x8x16xf32, #tpu.memory_space<vmem>>, vector<2x1x16xf32>
    %7 = vector.shape_cast %6 : vector<2x1x16xf32> to vector<2x16xf32>
    %cst = arith.constant dense<0.000000e+00> : vector<2x32xf32>
    %8 = tpu.matmul %7, %0, %cst {dimension_numbers = #tpu.dot_dimension_numbers<[1], [0], [0], [1], [0, 0, 1, 1], [], []>} : vector<2x16xf32>, vector<16x32xf32>, vector<2x32xf32> -> vector<2x32xf32>
    %9 = vector.broadcast %2 : vector<1x32xf32> to vector<2x32xf32>
    %10 = arith.addf %8, %9 : vector<2x32xf32>
    %cst_14 = arith.constant dense<0.000000e+00> : vector<2x32xf32>
    %11 = tpu.matmul %5, %1, %cst_14 {dimension_numbers = #tpu.dot_dimension_numbers<[1], [0], [0], [1], [0, 0, 1, 1], [], []>} : vector<2x32xf32>, vector<32x32xf32>, vector<2x32xf32> -> vector<2x32xf32>
    %12 = arith.addf %10, %11 : vector<2x32xf32>
    %13 = math.tanh %12 : vector<2x32xf32>
    %cst_15 = arith.constant dense<0.000000e+00> : vector<2x128xf32>
    %14 = tpu.matmul %13, %3, %cst_15 {dimension_numbers = #tpu.dot_dimension_numbers<[1], [0], [0], [1], [0, 0, 1, 1], [], []>} : vector<2x32xf32>, vector<32x128xf32>, vector<2x128xf32> -> vector<2x128xf32>
    %15 = vector.broadcast %4 : vector<1x128xf32> to vector<2x128xf32>
    %16 = arith.addf %14, %15 : vector<2x128xf32>
    %17 = arith.negf %16 : vector<2x128xf32>
    %18 = math.exp %17 : vector<2x128xf32>
    %cst_16 = arith.constant 1.000000e+00 : f32
    %19 = vector.broadcast %cst_16 : f32 to vector<2x128xf32>
    %20 = arith.addf %19, %18 : vector<2x128xf32>
    %21 = arith.divf %19, %20 : vector<2x128xf32>
    %c0_17 = arith.constant 0 : index
    %c0_18 = arith.constant 0 : index
    %c0_19 = arith.constant 0 : index
    %22 = vector.load %arg8[%c0_17, %c0_18, %c0_19] : memref<2x8x128xf32, #tpu.memory_space<vmem>>, vector<2x1x128xf32>
    %23 = vector.shape_cast %22 : vector<2x1x128xf32> to vector<2x128xf32>
    %24 = vector.shape_cast %21 : vector<2x128xf32> to vector<2x1x128xf32>
    tpu.vector_store %arg8[%c0_17, %c0_18, %c0_19], %24 {strides = array<i32>} : memref<2x8x128xf32, #tpu.memory_space<vmem>>, vector<2x1x128xf32>,
    %c0_20 = arith.constant 0 : index
    %c1 = arith.constant 1 : index
    %c0_21 = arith.constant 0 : index
    %25 = vector.load %arg1[%c0_20, %c1, %c0_21] : memref<2x8x16xf32, #tpu.memory_space<vmem>>, vector<2x1x16xf32>
    %26 = vector.shape_cast %25 : vector<2x1x16xf32> to vector<2x16xf32>
    %cst_22 = arith.constant dense<0.000000e+00> : vector<2x32xf32>
    %27 = tpu.matmul %26, %0, %cst_22 {dimension_numbers = #tpu.dot_dimension_numbers<[1], [0], [0], [1], [0, 0, 1, 1], [], []>} : vector<2x16xf32>, vector<16x32xf32>, vector<2x32xf32> -> vector<2x32xf32>
    %28 = vector.broadcast %2 : vector<1x32xf32> to vector<2x32xf32>
    %29 = arith.addf %27, %28 : vector<2x32xf32>
    %cst_23 = arith.constant dense<0.000000e+00> : vector<2x32xf32>
    %30 = tpu.matmul %13, %1, %cst_23 {dimension_numbers = #tpu.dot_dimension_numbers<[1], [0], [0], [1], [0, 0, 1, 1], [], []>} : vector<2x32xf32>, vector<32x32xf32>, vector<2x32xf32> -> vector<2x32xf32>
    %31 = arith.addf %29, %30 : vector<2x32xf32>
    %32 = math.tanh %31 : vector<2x32xf32>
    %cst_24 = arith.constant dense<0.000000e+00> : vector<2x128xf32>
    %33 = tpu.matmul %32, %3, %cst_24 {dimension_numbers = #tpu.dot_dimension_numbers<[1], [0], [0], [1], [0, 0, 1, 1], [], []>} : vector<2x32xf32>, vector<32x128xf32>, vector<2x128xf32> -> vector<2x128xf32>
    %34 = vector.broadcast %4 : vector<1x128xf32> to vector<2x128xf32>
    %35 = arith.addf %33, %34 : vector<2x128xf32>
    %36 = arith.negf %35 : vector<2x128xf32>
    %37 = math.exp %36 : vector<2x128xf32>
    %cst_25 = arith.constant 1.000000e+00 : f32
    %38 = vector.broadcast %cst_25 : f32 to vector<2x128xf32>
    %39 = arith.addf %38, %37 : vector<2x128xf32>
    %40 = arith.divf %38, %39 : vector<2x128xf32>
    %c0_26 = arith.constant 0 : index
    %c1_27 = arith.constant 1 : index
    %c0_28 = arith.constant 0 : index
    %41 = vector.load %arg8[%c0_26, %c1_27, %c0_28] : memref<2x8x128xf32, #tpu.memory_space<vmem>>, vector<2x1x128xf32>
    %42 = vector.shape_cast %41 : vector<2x1x128xf32> to vector<2x128xf32>
    %43 = vector.shape_cast %40 : vector<2x128xf32> to vector<2x1x128xf32>
    tpu.vector_store %arg8[%c0_26, %c1_27, %c0_28], %43 {strides = array<i32>} : memref<2x8x128xf32, #tpu.memory_space<vmem>>, vector<2x1x128xf32>,
    %c0_29 = arith.constant 0 : index
    %c2 = arith.constant 2 : index
    %c0_30 = arith.constant 0 : index
    %44 = vector.load %arg1[%c0_29, %c2, %c0_30] : memref<2x8x16xf32, #tpu.memory_space<vmem>>, vector<2x1x16xf32>
    %45 = vector.shape_cast %44 : vector<2x1x16xf32> to vector<2x16xf32>
    %cst_31 = arith.constant dense<0.000000e+00> : vector<2x32xf32>
    %46 = tpu.matmul %45, %0, %cst_31 {dimension_numbers = #tpu.dot_dimension_numbers<[1], [0], [0], [1], [0, 0, 1, 1], [], []>} : vector<2x16xf32>, vector<16x32xf32>, vector<2x32xf32> -> vector<2x32xf32>
    %47 = vector.broadcast %2 : vector<1x32xf32> to vector<2x32xf32>
    %48 = arith.addf %46, %47 : vector<2x32xf32>
    %cst_32 = arith.constant dense<0.000000e+00> : vector<2x32xf32>
    %49 = tpu.matmul %32, %1, %cst_32 {dimension_numbers = #tpu.dot_dimension_numbers<[1], [0], [0], [1], [0, 0, 1, 1], [], []>} : vector<2x32xf32>, vector<32x32xf32>, vector<2x32xf32> -> vector<2x32xf32>
    %50 = arith.addf %48, %49 : vector<2x32xf32>
    %51 = math.tanh %50 : vector<2x32xf32>
    %cst_33 = arith.constant dense<0.000000e+00> : vector<2x128xf32>
    %52 = tpu.matmul %51, %3, %cst_33 {dimension_numbers = #tpu.dot_dimension_numbers<[1], [0], [0], [1], [0, 0, 1, 1], [], []>} : vector<2x32xf32>, vector<32x128xf32>, vector<2x128xf32> -> vector<2x128xf32>
    %53 = vector.broadcast %4 : vector<1x128xf32> to vector<2x128xf32>
    %54 = arith.addf %52, %53 : vector<2x128xf32>
    %55 = arith.negf %54 : vector<2x128xf32>
    %56 = math.exp %55 : vector<2x128xf32>
    %cst_34 = arith.constant 1.000000e+00 : f32
    %57 = vector.broadcast %cst_34 : f32 to vector<2x128xf32>
    %58 = arith.addf %57, %56 : vector<2x128xf32>
    %59 = arith.divf %57, %58 : vector<2x128xf32>
    %c0_35 = arith.constant 0 : index
    %c2_36 = arith.constant 2 : index
    %c0_37 = arith.constant 0 : index
    %60 = vector.load %arg8[%c0_35, %c2_36, %c0_37] : memref<2x8x128xf32, #tpu.memory_space<vmem>>, vector<2x1x128xf32>
    %61 = vector.shape_cast %60 : vector<2x1x128xf32> to vector<2x128xf32>
    %62 = vector.shape_cast %59 : vector<2x128xf32> to vector<2x1x128xf32>
    tpu.vector_store %arg8[%c0_35, %c2_36, %c0_37], %62 {strides = array<i32>} : memref<2x8x128xf32, #tpu.memory_space<vmem>>, vector<2x1x128xf32>,
    %c0_38 = arith.constant 0 : index
    %c3 = arith.constant 3 : index
    %c0_39 = arith.constant 0 : index
    %63 = vector.load %arg1[%c0_38, %c3, %c0_39] : memref<2x8x16xf32, #tpu.memory_space<vmem>>, vector<2x1x16xf32>
    %64 = vector.shape_cast %63 : vector<2x1x16xf32> to vector<2x16xf32>
    %cst_40 = arith.constant dense<0.000000e+00> : vector<2x32xf32>
    %65 = tpu.matmul %64, %0, %cst_40 {dimension_numbers = #tpu.dot_dimension_numbers<[1], [0], [0], [1], [0, 0, 1, 1], [], []>} : vector<2x16xf32>, vector<16x32xf32>, vector<2x32xf32> -> vector<2x32xf32>
    %66 = vector.broadcast %2 : vector<1x32xf32> to vector<2x32xf32>
    %67 = arith.addf %65, %66 : vector<2x32xf32>
    %cst_41 = arith.constant dense<0.000000e+00> : vector<2x32xf32>
    %68 = tpu.matmul %51, %1, %cst_41 {dimension_numbers = #tpu.dot_dimension_numbers<[1], [0], [0], [1], [0, 0, 1, 1], [], []>} : vector<2x32xf32>, vector<32x32xf32>, vector<2x32xf32> -> vector<2x32xf32>
    %69 = arith.addf %67, %68 : vector<2x32xf32>
    %70 = math.tanh %69 : vector<2x32xf32>
    %cst_42 = arith.constant dense<0.000000e+00> : vector<2x128xf32>
    %71 = tpu.matmul %70, %3, %cst_42 {dimension_numbers = #tpu.dot_dimension_numbers<[1], [0], [0], [1], [0, 0, 1, 1], [], []>} : vector<2x32xf32>, vector<32x128xf32>, vector<2x128xf32> -> vector<2x128xf32>
    %72 = vector.broadcast %4 : vector<1x128xf32> to vector<2x128xf32>
    %73 = arith.addf %71, %72 : vector<2x128xf32>
    %74 = arith.negf %73 : vector<2x128xf32>
    %75 = math.exp %74 : vector<2x128xf32>
    %cst_43 = arith.constant 1.000000e+00 : f32
    %76 = vector.broadcast %cst_43 : f32 to vector<2x128xf32>
    %77 = arith.addf %76, %75 : vector<2x128xf32>
    %78 = arith.divf %76, %77 : vector<2x128xf32>
    %c0_44 = arith.constant 0 : index
    %c3_45 = arith.constant 3 : index
    %c0_46 = arith.constant 0 : index
    %79 = vector.load %arg8[%c0_44, %c3_45, %c0_46] : memref<2x8x128xf32, #tpu.memory_space<vmem>>, vector<2x1x128xf32>
    %80 = vector.shape_cast %79 : vector<2x1x128xf32> to vector<2x128xf32>
    %81 = vector.shape_cast %78 : vector<2x128xf32> to vector<2x1x128xf32>
    tpu.vector_store %arg8[%c0_44, %c3_45, %c0_46], %81 {strides = array<i32>} : memref<2x8x128xf32, #tpu.memory_space<vmem>>, vector<2x1x128xf32>,
    %c0_47 = arith.constant 0 : index
    %c4 = arith.constant 4 : index
    %c0_48 = arith.constant 0 : index
    %82 = vector.load %arg1[%c0_47, %c4, %c0_48] : memref<2x8x16xf32, #tpu.memory_space<vmem>>, vector<2x1x16xf32>
    %83 = vector.shape_cast %82 : vector<2x1x16xf32> to vector<2x16xf32>
    %cst_49 = arith.constant dense<0.000000e+00> : vector<2x32xf32>
    %84 = tpu.matmul %83, %0, %cst_49 {dimension_numbers = #tpu.dot_dimension_numbers<[1], [0], [0], [1], [0, 0, 1, 1], [], []>} : vector<2x16xf32>, vector<16x32xf32>, vector<2x32xf32> -> vector<2x32xf32>
    %85 = vector.broadcast %2 : vector<1x32xf32> to vector<2x32xf32>
    %86 = arith.addf %84, %85 : vector<2x32xf32>
    %cst_50 = arith.constant dense<0.000000e+00> : vector<2x32xf32>
    %87 = tpu.matmul %70, %1, %cst_50 {dimension_numbers = #tpu.dot_dimension_numbers<[1], [0], [0], [1], [0, 0, 1, 1], [], []>} : vector<2x32xf32>, vector<32x32xf32>, vector<2x32xf32> -> vector<2x32xf32>
    %88 = arith.addf %86, %87 : vector<2x32xf32>
    %89 = math.tanh %88 : vector<2x32xf32>
    %cst_51 = arith.constant dense<0.000000e+00> : vector<2x128xf32>
    %90 = tpu.matmul %89, %3, %cst_51 {dimension_numbers = #tpu.dot_dimension_numbers<[1], [0], [0], [1], [0, 0, 1, 1], [], []>} : vector<2x32xf32>, vector<32x128xf32>, vector<2x128xf32> -> vector<2x128xf32>
    %91 = vector.broadcast %4 : vector<1x128xf32> to vector<2x128xf32>
    %92 = arith.addf %90, %91 : vector<2x128xf32>
    %93 = arith.negf %92 : vector<2x128xf32>
    %94 = math.exp %93 : vector<2x128xf32>
    %cst_52 = arith.constant 1.000000e+00 : f32
    %95 = vector.broadcast %cst_52 : f32 to vector<2x128xf32>
    %96 = arith.addf %95, %94 : vector<2x128xf32>
    %97 = arith.divf %95, %96 : vector<2x128xf32>
    %c0_53 = arith.constant 0 : index
    %c4_54 = arith.constant 4 : index
    %c0_55 = arith.constant 0 : index
    %98 = vector.load %arg8[%c0_53, %c4_54, %c0_55] : memref<2x8x128xf32, #tpu.memory_space<vmem>>, vector<2x1x128xf32>
    %99 = vector.shape_cast %98 : vector<2x1x128xf32> to vector<2x128xf32>
    %100 = vector.shape_cast %97 : vector<2x128xf32> to vector<2x1x128xf32>
    tpu.vector_store %arg8[%c0_53, %c4_54, %c0_55], %100 {strides = array<i32>} : memref<2x8x128xf32, #tpu.memory_space<vmem>>, vector<2x1x128xf32>,
    %c0_56 = arith.constant 0 : index
    %c5 = arith.constant 5 : index
    %c0_57 = arith.constant 0 : index
    %101 = vector.load %arg1[%c0_56, %c5, %c0_57] : memref<2x8x16xf32, #tpu.memory_space<vmem>>, vector<2x1x16xf32>
    %102 = vector.shape_cast %101 : vector<2x1x16xf32> to vector<2x16xf32>
    %cst_58 = arith.constant dense<0.000000e+00> : vector<2x32xf32>
    %103 = tpu.matmul %102, %0, %cst_58 {dimension_numbers = #tpu.dot_dimension_numbers<[1], [0], [0], [1], [0, 0, 1, 1], [], []>} : vector<2x16xf32>, vector<16x32xf32>, vector<2x32xf32> -> vector<2x32xf32>
    %104 = vector.broadcast %2 : vector<1x32xf32> to vector<2x32xf32>
    %105 = arith.addf %103, %104 : vector<2x32xf32>
    %cst_59 = arith.constant dense<0.000000e+00> : vector<2x32xf32>
    %106 = tpu.matmul %89, %1, %cst_59 {dimension_numbers = #tpu.dot_dimension_numbers<[1], [0], [0], [1], [0, 0, 1, 1], [], []>} : vector<2x32xf32>, vector<32x32xf32>, vector<2x32xf32> -> vector<2x32xf32>
    %107 = arith.addf %105, %106 : vector<2x32xf32>
    %108 = math.tanh %107 : vector<2x32xf32>
    %cst_60 = arith.constant dense<0.000000e+00> : vector<2x128xf32>
    %109 = tpu.matmul %108, %3, %cst_60 {dimension_numbers = #tpu.dot_dimension_numbers<[1], [0], [0], [1], [0, 0, 1, 1], [], []>} : vector<2x32xf32>, vector<32x128xf32>, vector<2x128xf32> -> vector<2x128xf32>
    %110 = vector.broadcast %4 : vector<1x128xf32> to vector<2x128xf32>
    %111 = arith.addf %109, %110 : vector<2x128xf32>
    %112 = arith.negf %111 : vector<2x128xf32>
    %113 = math.exp %112 : vector<2x128xf32>
    %cst_61 = arith.constant 1.000000e+00 : f32
    %114 = vector.broadcast %cst_61 : f32 to vector<2x128xf32>
    %115 = arith.addf %114, %113 : vector<2x128xf32>
    %116 = arith.divf %114, %115 : vector<2x128xf32>
    %c0_62 = arith.constant 0 : index
    %c5_63 = arith.constant 5 : index
    %c0_64 = arith.constant 0 : index
    %117 = vector.load %arg8[%c0_62, %c5_63, %c0_64] : memref<2x8x128xf32, #tpu.memory_space<vmem>>, vector<2x1x128xf32>
    %118 = vector.shape_cast %117 : vector<2x1x128xf32> to vector<2x128xf32>
    %119 = vector.shape_cast %116 : vector<2x128xf32> to vector<2x1x128xf32>
    tpu.vector_store %arg8[%c0_62, %c5_63, %c0_64], %119 {strides = array<i32>} : memref<2x8x128xf32, #tpu.memory_space<vmem>>, vector<2x1x128xf32>,
    %c0_65 = arith.constant 0 : index
    %c6 = arith.constant 6 : index
    %c0_66 = arith.constant 0 : index
    %120 = vector.load %arg1[%c0_65, %c6, %c0_66] : memref<2x8x16xf32, #tpu.memory_space<vmem>>, vector<2x1x16xf32>
    %121 = vector.shape_cast %120 : vector<2x1x16xf32> to vector<2x16xf32>
    %cst_67 = arith.constant dense<0.000000e+00> : vector<2x32xf32>
    %122 = tpu.matmul %121, %0, %cst_67 {dimension_numbers = #tpu.dot_dimension_numbers<[1], [0], [0], [1], [0, 0, 1, 1], [], []>} : vector<2x16xf32>, vector<16x32xf32>, vector<2x32xf32> -> vector<2x32xf32>
    %123 = vector.broadcast %2 : vector<1x32xf32> to vector<2x32xf32>
    %124 = arith.addf %122, %123 : vector<2x32xf32>
    %cst_68 = arith.constant dense<0.000000e+00> : vector<2x32xf32>
    %125 = tpu.matmul %108, %1, %cst_68 {dimension_numbers = #tpu.dot_dimension_numbers<[1], [0], [0], [1], [0, 0, 1, 1], [], []>} : vector<2x32xf32>, vector<32x32xf32>, vector<2x32xf32> -> vector<2x32xf32>
    %126 = arith.addf %124, %125 : vector<2x32xf32>
    %127 = math.tanh %126 : vector<2x32xf32>
    %cst_69 = arith.constant dense<0.000000e+00> : vector<2x128xf32>
    %128 = tpu.matmul %127, %3, %cst_69 {dimension_numbers = #tpu.dot_dimension_numbers<[1], [0], [0], [1], [0, 0, 1, 1], [], []>} : vector<2x32xf32>, vector<32x128xf32>, vector<2x128xf32> -> vector<2x128xf32>
    %129 = vector.broadcast %4 : vector<1x128xf32> to vector<2x128xf32>
    %130 = arith.addf %128, %129 : vector<2x128xf32>
    %131 = arith.negf %130 : vector<2x128xf32>
    %132 = math.exp %131 : vector<2x128xf32>
    %cst_70 = arith.constant 1.000000e+00 : f32
    %133 = vector.broadcast %cst_70 : f32 to vector<2x128xf32>
    %134 = arith.addf %133, %132 : vector<2x128xf32>
    %135 = arith.divf %133, %134 : vector<2x128xf32>
    %c0_71 = arith.constant 0 : index
    %c6_72 = arith.constant 6 : index
    %c0_73 = arith.constant 0 : index
    %136 = vector.load %arg8[%c0_71, %c6_72, %c0_73] : memref<2x8x128xf32, #tpu.memory_space<vmem>>, vector<2x1x128xf32>
    %137 = vector.shape_cast %136 : vector<2x1x128xf32> to vector<2x128xf32>
    %138 = vector.shape_cast %135 : vector<2x128xf32> to vector<2x1x128xf32>
    tpu.vector_store %arg8[%c0_71, %c6_72, %c0_73], %138 {strides = array<i32>} : memref<2x8x128xf32, #tpu.memory_space<vmem>>, vector<2x1x128xf32>,
    %c0_74 = arith.constant 0 : index
    %c7 = arith.constant 7 : index
    %c0_75 = arith.constant 0 : index
    %139 = vector.load %arg1[%c0_74, %c7, %c0_75] : memref<2x8x16xf32, #tpu.memory_space<vmem>>, vector<2x1x16xf32>
    %140 = vector.shape_cast %139 : vector<2x1x16xf32> to vector<2x16xf32>
    %cst_76 = arith.constant dense<0.000000e+00> : vector<2x32xf32>
    %141 = tpu.matmul %140, %0, %cst_76 {dimension_numbers = #tpu.dot_dimension_numbers<[1], [0], [0], [1], [0, 0, 1, 1], [], []>} : vector<2x16xf32>, vector<16x32xf32>, vector<2x32xf32> -> vector<2x32xf32>
    %142 = vector.broadcast %2 : vector<1x32xf32> to vector<2x32xf32>
    %143 = arith.addf %141, %142 : vector<2x32xf32>
    %cst_77 = arith.constant dense<0.000000e+00> : vector<2x32xf32>
    %144 = tpu.matmul %127, %1, %cst_77 {dimension_numbers = #tpu.dot_dimension_numbers<[1], [0], [0], [1], [0, 0, 1, 1], [], []>} : vector<2x32xf32>, vector<32x32xf32>, vector<2x32xf32> -> vector<2x32xf32>
    %145 = arith.addf %143, %144 : vector<2x32xf32>
    %146 = math.tanh %145 : vector<2x32xf32>
    %cst_78 = arith.constant dense<0.000000e+00> : vector<2x128xf32>
    %147 = tpu.matmul %146, %3, %cst_78 {dimension_numbers = #tpu.dot_dimension_numbers<[1], [0], [0], [1], [0, 0, 1, 1], [], []>} : vector<2x32xf32>, vector<32x128xf32>, vector<2x128xf32> -> vector<2x128xf32>
    %148 = vector.broadcast %4 : vector<1x128xf32> to vector<2x128xf32>
    %149 = arith.addf %147, %148 : vector<2x128xf32>
    %150 = arith.negf %149 : vector<2x128xf32>
    %151 = math.exp %150 : vector<2x128xf32>
    %cst_79 = arith.constant 1.000000e+00 : f32
    %152 = vector.broadcast %cst_79 : f32 to vector<2x128xf32>
    %153 = arith.addf %152, %151 : vector<2x128xf32>
    %154 = arith.divf %152, %153 : vector<2x128xf32>
    %c0_80 = arith.constant 0 : index
    %c7_81 = arith.constant 7 : index
    %c0_82 = arith.constant 0 : index
    %155 = vector.load %arg8[%c0_80, %c7_81, %c0_82] : memref<2x8x128xf32, #tpu.memory_space<vmem>>, vector<2x1x128xf32>
    %156 = vector.shape_cast %155 : vector<2x1x128xf32> to vector<2x128xf32>
    %157 = vector.shape_cast %154 : vector<2x128xf32> to vector<2x1x128xf32>
    tpu.vector_store %arg8[%c0_80, %c7_81, %c0_82], %157 {strides = array<i32>} : memref<2x8x128xf32, #tpu.memory_space<vmem>>, vector<2x1x128xf32>,
    %c0_83 = arith.constant 0 : index
    %c0_84 = arith.constant 0 : index
    %158 = vector.load %arg9[%c0_83, %c0_84] : memref<2x32xf32, #tpu.memory_space<vmem>>, vector<2x32xf32>
    tpu.vector_store %arg9[%c0_83, %c0_84], %146 {strides = array<i32>} : memref<2x32xf32, #tpu.memory_space<vmem>>, vector<2x32xf32>,
    return
  }
  func.func @transform_0(%arg0: i32) -> (i32, i32, i32) {
    %c0_i32 = arith.constant 0 : i32
    %c0_i32_0 = arith.constant 0 : i32
    %c0_i32_1 = arith.constant 0 : i32
    return %arg0, %c0_i32, %c0_i32_0 : i32, i32, i32
  }
  func.func @transform_1(%arg0: i32) -> (i32, i32) {
    %c0_i32 = arith.constant 0 : i32
    %c0_i32_0 = arith.constant 0 : i32
    return %arg0, %c0_i32 : i32, i32
  }
  func.func @transform_2(%arg0: i32) -> (i32, i32) {
    %c0_i32 = arith.constant 0 : i32
    %c0_i32_0 = arith.constant 0 : i32
    %c0_i32_1 = arith.constant 0 : i32
    return %c0_i32, %c0_i32_0 : i32, i32
  }
  func.func @transform_3(%arg0: i32) -> (i32, i32) {
    %c0_i32 = arith.constant 0 : i32
    %c0_i32_0 = arith.constant 0 : i32
    %c0_i32_1 = arith.constant 0 : i32
    return %c0_i32, %c0_i32_0 : i32, i32
  }
  func.func @transform_4(%arg0: i32) -> (i32, i32) {
    %c0_i32 = arith.constant 0 : i32
    %c0_i32_0 = arith.constant 0 : i32
    %c0_i32_1 = arith.constant 0 : i32
    return %c0_i32, %c0_i32_0 : i32, i32
  }
  func.func @transform_5(%arg0: i32) -> (i32, i32) {
    %c0_i32 = arith.constant 0 : i32
    %c0_i32_0 = arith.constant 0 : i32
    %c0_i32_1 = arith.constant 0 : i32
    return %c0_i32, %c0_i32_0 : i32, i32
  }
  func.func @transform_6(%arg0: i32) -> (i32, i32) {
    %c0_i32 = arith.constant 0 : i32
    %c0_i32_0 = arith.constant 0 : i32
    %c0_i32_1 = arith.constant 0 : i32
    return %c0_i32, %c0_i32_0 : i32, i32
  }
  func.func @transform_7(%arg0: i32) -> (i32, i32, i32) {
    %c0_i32 = arith.constant 0 : i32
    %c0_i32_0 = arith.constant 0 : i32
    %c0_i32_1 = arith.constant 0 : i32
    return %arg0, %c0_i32, %c0_i32_0 : i32, i32, i32
  }
  func.func @transform_8(%arg0: i32) -> (i32, i32) {
    %c0_i32 = arith.constant 0 : i32
    %c0_i32_0 = arith.constant 0 : i32
    return %arg0, %c0_i32 : i32, i32
  }
}

</mosaic_0001>

<llo_original>
// kernel: tpu_custom_call.1
$region0: #{tpu_custom_call.1}
  #allocation0 [shape = 'u32[]', space=smem, size = 0x4, offset = 0x4, fixed_abs, tag = 'smem constant byte address 0x4 - core index']
  #allocation1 [shape = 'u32[144,128]{1,0:T(1,128)}', space=vmem, size = 0x12000, scoped, tag = 'internal scratch']
  %s0 = inlined_call_operand.hbm [shape: f32[2,8,16], index: 0, kind: input, shape index: {}]
  %s1 = inlined_call_operand.vmem [shape: f32[2,32], index: 1, kind: input, shape index: {}]
  %s2 = inlined_call_operand.hbm [shape: f32[16,32], index: 2, kind: input, shape index: {}]
  %s3 = inlined_call_operand.hbm [shape: f32[32,32], index: 3, kind: input, shape index: {}]
  %s4 = inlined_call_operand.vmem [shape: f32[1,32], index: 4, kind: input, shape index: {}]
  %s5 = inlined_call_operand.hbm [shape: f32[32,128], index: 5, kind: input, shape index: {}]
  %s6 = inlined_call_operand.vmem [shape: f32[1,128], index: 6, kind: input, shape index: {}]
  %s7 = inlined_call_operand.hbm [shape: f32[2,8,128], index: 7, kind: output, shape index: {0}]
  %s8 = inlined_call_operand.hbm [shape: f32[2,32], index: 8, kind: output, shape index: {1}]
  %9 = xla_tuple %s7, %s8
  %s10 = sld [smem:[#allocation0]]
  $region62: #{tpu_custom_call.1} parent=0
    _
  %s12 = ssub.s32 1, %s10
  %s13 = scalar_select 0, %s12, %s10
  $region1: #{tpu_custom_call.1} parent=0
    #allocation2 [shape = 'u8[8192]{0}', space=vmem, size = 0x2000, scoped, tag = 'input window, operand 0, single buffered']
    #allocation3 [shape = 's32[1]{0}', space=sflag, size = 0x4, scoped, tag = 'scoped memory for tpu_custom_call.1']
    #allocation4 [shape = 's32[1]{0}', space=sflag, size = 0x4, scoped, tag = 'scoped memory for tpu_custom_call.1']
    #allocation5 [shape = 'u8[8192]{0}', space=vmem, size = 0x2000, scoped, tag = 'input window, operand 2, single buffered']
    #allocation6 [shape = 's32[1]{0}', space=sflag, size = 0x4, scoped, tag = 'scoped memory for tpu_custom_call.1']
    #allocation7 [shape = 'u8[16384]{0}', space=vmem, size = 0x4000, scoped, tag = 'input window, operand 3, single buffered']
    #allocation8 [shape = 'u8[16384]{0}', space=vmem, size = 0x4000, scoped, tag = 'input window, operand 5, single buffered']
    #allocation9 [shape = 's32[1]{0}', space=sflag, size = 0x4, scoped, tag = 'scoped memory for tpu_custom_call.1']
    #allocation10 [shape = 'u8[8192]{0}', space=vmem, size = 0x2000, scoped, tag = 'output window, operand 0, single buffered']
    #allocation11 [shape = 'u8[1024]{0}', space=vmem, size = 0x400, scoped, tag = 'output window, operand 1, single buffered']
    #allocation12 [shape = 's32[1]{0}', space=sflag, size = 0x4, scoped, tag = 'scoped memory for tpu_custom_call.1']
    %14 = vsyncpa [#allocation3], 0
    %15 = vsyncpa [#allocation6], 0
    %16 = vsyncpa [#allocation9], 0
    %17 = vsyncpa [#allocation4], 0
    %18 = vsyncpa [#allocation12], 0
    // Predicated region
    $region2: #{tpu_custom_call.1} parent=1 // pred_check
      _
    $region3: #{tpu_custom_call.1} parent=1 // pred_check_branch
      %20 = sbr.rel (0) target = $region5
    $region4: #{tpu_custom_call.1} parent=1 // pred_region
      %s22 = ssub.s32 256, 256
      %23 = vsyncadd [#allocation3], %s22
      %s24 = sshll.u32 [#allocation2], 4
      %s25 = int_to_ptr.vmem [resolvable:$true] %s24
      %30 = dma.hbm_to_vmem [thread:$0]  %s0, 256, %s25, [#allocation3], 128, 128, 8
    $region5: #{tpu_custom_call.1} parent=1 // pred_fallthru
      _
    // Predicated region
    $region6: #{tpu_custom_call.1} parent=1 // pred_check
      _
    $region7: #{tpu_custom_call.1} parent=1 // pred_check_branch
      %32 = sbr.rel (0) target = $region9
    $region8: #{tpu_custom_call.1} parent=1 // pred_region
      _
    $region9: #{tpu_custom_call.1} parent=1 // pred_fallthru
      _
    // Predicated region
    $region10: #{tpu_custom_call.1} parent=1 // pred_check
      _
    $region11: #{tpu_custom_call.1} parent=1 // pred_check_branch
      %34 = sbr.rel (0) target = $region13
    $region12: #{tpu_custom_call.1} parent=1 // pred_region
      %s36 = ssub.s32 256, 256
      %37 = vsyncadd [#allocation6], %s36
      %s38 = sshll.u32 [#allocation5], 4
      %s39 = int_to_ptr.vmem [resolvable:$true] %s38
      %44 = dma.hbm_to_vmem [thread:$0]  %s2, 256, %s39, [#allocation6], 128, 128, 8
    $region13: #{tpu_custom_call.1} parent=1 // pred_fallthru
      _
    // Predicated region
    $region14: #{tpu_custom_call.1} parent=1 // pred_check
      _
    $region15: #{tpu_custom_call.1} parent=1 // pred_check_branch
      %46 = sbr.rel (0) target = $region17
    $region16: #{tpu_custom_call.1} parent=1 // pred_region
      %s48 = ssub.s32 512, 512
      %49 = vsyncadd [#allocation6], %s48
      %s50 = sshll.u32 [#allocation7], 4
      %s51 = int_to_ptr.vmem [resolvable:$true] %s50
      %56 = dma.hbm_to_vmem [thread:$0]  %s3, 512, %s51, [#allocation6], 128, 128, 8
    $region17: #{tpu_custom_call.1} parent=1 // pred_fallthru
      _
    // Predicated region
    $region18: #{tpu_custom_call.1} parent=1 // pred_check
      _
    $region19: #{tpu_custom_call.1} parent=1 // pred_check_branch
      %58 = sbr.rel (0) target = $region21
    $region20: #{tpu_custom_call.1} parent=1 // pred_region
      _
    $region21: #{tpu_custom_call.1} parent=1 // pred_fallthru
      _
    // Predicated region
    $region22: #{tpu_custom_call.1} parent=1 // pred_check
      _
    $region23: #{tpu_custom_call.1} parent=1 // pred_check_branch
      %60 = sbr.rel (0) target = $region25
    $region24: #{tpu_custom_call.1} parent=1 // pred_region
      %s62 = ssub.s32 512, 512
      %63 = vsyncadd [#allocation9], %s62
      %s64 = sshll.u32 [#allocation8], 4
      %s65 = int_to_ptr.vmem [resolvable:$true] %s64
      %70 = dma.hbm_to_vmem [thread:$0]  %s5, 512, %s65, [#allocation9], 128, 128, 8
    $region25: #{tpu_custom_call.1} parent=1 // pred_fallthru
      _
    // Predicated region
    $region26: #{tpu_custom_call.1} parent=1 // pred_check
      _
    $region27: #{tpu_custom_call.1} parent=1 // pred_check_branch
      %72 = sbr.rel (0) target = $region29
    $region28: #{tpu_custom_call.1} parent=1 // pred_region
      _
    $region29: #{tpu_custom_call.1} parent=1 // pred_fallthru
      _
    // Predicated region
    $region30: #{tpu_custom_call.1} parent=1 // pred_check
      _
    $region31: #{tpu_custom_call.1} parent=1 // pred_check_branch
      %74 = sbr.rel (0) target = $region33
    $region32: #{tpu_custom_call.1} parent=1 // pred_region
      %75 = dma.done [#allocation3], 256
    $region33: #{tpu_custom_call.1} parent=1 // pred_fallthru
      _
    // Predicated region
    $region34: #{tpu_custom_call.1} parent=1 // pred_check
      _
    $region35: #{tpu_custom_call.1} parent=1 // pred_check_branch
      %77 = sbr.rel (0) target = $region37
    $region36: #{tpu_custom_call.1} parent=1 // pred_region
      %78 = dma.done [#allocation6], 256
    $region37: #{tpu_custom_call.1} parent=1 // pred_fallthru
      _
    // Predicated region
    $region38: #{tpu_custom_call.1} parent=1 // pred_check
      _
    $region39: #{tpu_custom_call.1} parent=1 // pred_check_branch
      %80 = sbr.rel (0) target = $region41
    $region40: #{tpu_custom_call.1} parent=1 // pred_region
      %81 = dma.done [#allocation6], 512
    $region41: #{tpu_custom_call.1} parent=1 // pred_fallthru
      _
    // Predicated region
    $region42: #{tpu_custom_call.1} parent=1 // pred_check
      _
    $region43: #{tpu_custom_call.1} parent=1 // pred_check_branch
      %83 = sbr.rel (0) target = $region45
    $region44: #{tpu_custom_call.1} parent=1 // pred_region
      %84 = dma.done [#allocation9], 512
    $region45: #{tpu_custom_call.1} parent=1 // pred_fallthru
      _
    %v85 = vld [vmem:[#allocation5] sm:$0xff]
    %v86 = vld [vmem:[#allocation5 + $0x8] sm:$0xff]
    %v87 = vld [vmem:[#allocation7] sm:$0xff]
    %v88 = vld [vmem:[#allocation7 + $0x8] sm:$0xff]
    %v89 = vld [vmem:[#allocation7 + $0x10] sm:$0xff]
    %v90 = vld [vmem:[#allocation7 + $0x18] sm:$0xff]
    %v91 = vld [vmem:[%s4] sm:$0x1]
    %v92 = vld [vmem:[#allocation8] sm:$0xff]
    %v93 = vld [vmem:[#allocation8 + $0x8] sm:$0xff]
    %v94 = vld [vmem:[#allocation8 + $0x10] sm:$0xff]
    %v95 = vld [vmem:[#allocation8 + $0x18] sm:$0xff]
    %v96 = vld [vmem:[%s6] sm:$0x1]
    %v97 = vld [vmem:[%s1] sm:$0x3]
    %v98 = vld [vmem:[#allocation2] sm:$0x1]
    %v99 = vld [vmem:[#allocation2 + $0x8] sm:$0x1]
    %v101 = vlaneseq
    %v102 = vshrl.u32 %v101, 7
    %v103 = vsub.s32 0, %v102
    %v104 = vrot.slane %v91, %v103
    %v108 = vrot.slane %v99, 7
    %vm109 = vcmask 1041409
    %v110 = vsel %vm109, %v108, %v98
    %vm111 = vcmask 130048
    %v112 = vsel %vm111, %v110, 0
    %114 = vmatprep.subr.mxu0 0.0
    %115 = vmatpush1.msra.mxu0 %v85
    %116 = vmatprep.subr.mxu0 0.0
    %117 = vmatpush1.msra.mxu0 %v86
    %118 = vmatprep.subr.mxu0 0.0
    %119 = vmatpush1.msra.mxu0 0.0
    %120 = vmatprep.subr.mxu0 0.0
    %121 = vmatpush1.msra.mxu0 0.0
    %122 = vmatprep.subr.mxu0 0.0
    %123 = vmatpush1.msra.mxu0 0.0
    %124 = vmatprep.subr.mxu0 0.0
    %125 = vmatpush1.msra.mxu0 0.0
    %126 = vmatprep.subr.mxu0 0.0
    %127 = vmatpush1.msra.mxu0 0.0
    %128 = vmatprep.subr.mxu0 0.0
    %129 = vmatpush1.msra.mxu0 0.0
    %130 = vmatprep.subr.mxu0 0.0
    %131 = vmatpush1.msra.mxu0 0.0
    %132 = vmatprep.subr.mxu0 0.0
    %133 = vmatpush1.msra.mxu0 0.0
    %134 = vmatprep.subr.mxu0 0.0
    %135 = vmatpush1.msra.mxu0 0.0
    %136 = vmatprep.subr.mxu0 0.0
    %137 = vmatpush1.msra.mxu0 0.0
    %138 = vmatprep.subr.mxu0 0.0
    %139 = vmatpush1.msra.mxu0 0.0
    %140 = vmatprep.subr.mxu0 0.0
    %141 = vmatpush1.msra.mxu0 0.0
    %142 = vmatprep.subr.mxu0 0.0
    %143 = vmatpush1.msra.mxu0 0.0
    %144 = vmatprep.subr.mxu0 0.0
    %145 = vmatpush1.msra.mxu0 0.0
    %146 = vmatprep.subr.mxu0 0.0
    %147 = vmatpush1.msra.mxu0 0.0
    %148 = vmatprep.subr.mxu0 0.0
    %149 = vmatpush1.msra.mxu0 0.0
    %150 = vmatprep.subr.mxu0 0.0
    %151 = vmatpush1.msra.mxu0 0.0
    %152 = vmatprep.subr.mxu0 0.0
    %153 = vmatpush1.msra.mxu0 0.0
    %154 = vmatprep.subr.mxu0 0.0
    %155 = vmatpush1.msra.mxu0 0.0
    %156 = vmatprep.subr.mxu0 0.0
    %157 = vmatpush1.msra.mxu0 0.0
    %158 = vmatprep.subr.mxu0 0.0
    %159 = vmatpush1.msra.mxu0 0.0
    %160 = vmatprep.subr.mxu0 0.0
    %161 = vmatpush1.msra.mxu0 0.0
    %162 = vmatprep.subr.mxu0 0.0
    %163 = vmatpush1.msra.mxu0 0.0
    %164 = vmatprep.subr.mxu0 0.0
    %165 = vmatpush1.msra.mxu0 0.0
    %166 = vmatprep.subr.mxu0 0.0
    %167 = vmatpush1.msra.mxu0 0.0
    %168 = vmatprep.subr.mxu0 0.0
    %169 = vmatpush1.msra.mxu0 0.0
    %170 = vmatprep.subr.mxu0 0.0
    %171 = vmatpush1.msra.mxu0 0.0
    %172 = vmatprep.subr.mxu0 0.0
    %173 = vmatpush1.msra.mxu0 0.0
    %174 = vmatprep.subr.mxu0 0.0
    %175 = vmatpush1.msra.mxu0 0.0
    %176 = vmatprep.subr.mxu0 0.0
    %177 = vmatpush1.msra.mxu0 0.0
    %178 = vmatprep.mubr.f32.mxu0 0.0
    %179 = vmatmul.mubr.f32.gmra.mrb[0].mxu0 %v112
    %v180 = vpop.f32.mrb[0].mxu0
    %v181 = vadd.f32 %v104, %v180
    %v182 = vpop.f32.mrb[0].mxu0
    %183 = vdwg.mxu0
    %vm184 = vcmask 261120
    %v186 = vsel %vm184, %v97, 0
    %188 = vmatprep.subr.mxu0 0.0
    %189 = vmatpush1.msra.mxu0 %v87
    %190 = vmatprep.subr.mxu0 0.0
    %191 = vmatpush1.msra.mxu0 %v88
    %192 = vmatprep.subr.mxu0 0.0
    %193 = vmatpush1.msra.mxu0 %v89
    %194 = vmatprep.subr.mxu0 0.0
    %195 = vmatpush1.msra.mxu0 %v90
    %196 = vmatprep.subr.mxu0 0.0
    %197 = vmatpush1.msra.mxu0 0.0
    %198 = vmatprep.subr.mxu0 0.0
    %199 = vmatpush1.msra.mxu0 0.0
    %200 = vmatprep.subr.mxu0 0.0
    %201 = vmatpush1.msra.mxu0 0.0
    %202 = vmatprep.subr.mxu0 0.0
    %203 = vmatpush1.msra.mxu0 0.0
    %204 = vmatprep.subr.mxu0 0.0
    %205 = vmatpush1.msra.mxu0 0.0
    %206 = vmatprep.subr.mxu0 0.0
    %207 = vmatpush1.msra.mxu0 0.0
    %208 = vmatprep.subr.mxu0 0.0
    %209 = vmatpush1.msra.mxu0 0.0
    %210 = vmatprep.subr.mxu0 0.0
    %211 = vmatpush1.msra.mxu0 0.0
    %212 = vmatprep.subr.mxu0 0.0
    %213 = vmatpush1.msra.mxu0 0.0
    %214 = vmatprep.subr.mxu0 0.0
    %215 = vmatpush1.msra.mxu0 0.0
    %216 = vmatprep.subr.mxu0 0.0
    %217 = vmatpush1.msra.mxu0 0.0
    %218 = vmatprep.subr.mxu0 0.0
    %219 = vmatpush1.msra.mxu0 0.0
    %220 = vmatprep.subr.mxu0 0.0
    %221 = vmatpush1.msra.mxu0 0.0
    %222 = vmatprep.subr.mxu0 0.0
    %223 = vmatpush1.msra.mxu0 0.0
    %224 = vmatprep.subr.mxu0 0.0
    %225 = vmatpush1.msra.mxu0 0.0
    %226 = vmatprep.subr.mxu0 0.0
    %227 = vmatpush1.msra.mxu0 0.0
    %228 = vmatprep.subr.mxu0 0.0
    %229 = vmatpush1.msra.mxu0 0.0
    %230 = vmatprep.subr.mxu0 0.0
    %231 = vmatpush1.msra.mxu0 0.0
    %232 = vmatprep.subr.mxu0 0.0
    %233 = vmatpush1.msra.mxu0 0.0
    %234 = vmatprep.subr.mxu0 0.0
    %235 = vmatpush1.msra.mxu0 0.0
    %236 = vmatprep.subr.mxu0 0.0
    %237 = vmatpush1.msra.mxu0 0.0
    %238 = vmatprep.subr.mxu0 0.0
    %239 = vmatpush1.msra.mxu0 0.0
    %240 = vmatprep.subr.mxu0 0.0
    %241 = vmatpush1.msra.mxu0 0.0
    %242 = vmatprep.subr.mxu0 0.0
    %243 = vmatpush1.msra.mxu0 0.0
    %244 = vmatprep.subr.mxu0 0.0
    %245 = vmatpush1.msra.mxu0 0.0
    %246 = vmatprep.subr.mxu0 0.0
    %247 = vmatpush1.msra.mxu0 0.0
    %248 = vmatprep.subr.mxu0 0.0
    %249 = vmatpush1.msra.mxu0 0.0
    %250 = vmatprep.subr.mxu0 0.0
    %251 = vmatpush1.msra.mxu0 0.0
    %252 = vmatprep.mubr.f32.mxu0 0.0
    %253 = vmatmul.mubr.f32.gmra.mrb[0].mxu0 %v186
    %v254 = vpop.f32.mrb[0].mxu0
    %v255 = vadd.f32 0.0, %v254
    %v256 = vpop.f32.mrb[0].mxu0
    %257 = vdwg.mxu0
    %v258 = vadd.f32 %v181, %v255
    %v259 = vtanh.pop %v258
    %v261 = vlaneseq
    %v262 = vshrl.u32 %v261, 7
    %v263 = vsub.s32 0, %v262
    %v264 = vrot.slane %v96, %v263
    %v267 = vsel %vm184, %v259, 0
    %269 = vmatprep.subr.mxu0 0.0
    %270 = vmatpush1.msra.mxu0 %v92
    %271 = vmatprep.subr.mxu0 0.0
    %272 = vmatpush1.msra.mxu0 %v93
    %273 = vmatprep.subr.mxu0 0.0
    %274 = vmatpush1.msra.mxu0 %v94
    %275 = vmatprep.subr.mxu0 0.0
    %276 = vmatpush1.msra.mxu0 %v95
    %277 = vmatprep.subr.mxu0 0.0
    %278 = vmatpush1.msra.mxu0 0.0
    %279 = vmatprep.subr.mxu0 0.0
    %280 = vmatpush1.msra.mxu0 0.0
    %281 = vmatprep.subr.mxu0 0.0
    %282 = vmatpush1.msra.mxu0 0.0
    %283 = vmatprep.subr.mxu0 0.0
    %284 = vmatpush1.msra.mxu0 0.0
    %285 = vmatprep.subr.mxu0 0.0
    %286 = vmatpush1.msra.mxu0 0.0
    %287 = vmatprep.subr.mxu0 0.0
    %288 = vmatpush1.msra.mxu0 0.0
    %289 = vmatprep.subr.mxu0 0.0
    %290 = vmatpush1.msra.mxu0 0.0
    %291 = vmatprep.subr.mxu0 0.0
    %292 = vmatpush1.msra.mxu0 0.0
    %293 = vmatprep.subr.mxu0 0.0
    %294 = vmatpush1.msra.mxu0 0.0
    %295 = vmatprep.subr.mxu0 0.0
    %296 = vmatpush1.msra.mxu0 0.0
    %297 = vmatprep.subr.mxu0 0.0
    %298 = vmatpush1.msra.mxu0 0.0
    %299 = vmatprep.subr.mxu0 0.0
    %300 = vmatpush1.msra.mxu0 0.0
    %301 = vmatprep.subr.mxu0 0.0
    %302 = vmatpush1.msra.mxu0 0.0
    %303 = vmatprep.subr.mxu0 0.0
    %304 = vmatpush1.msra.mxu0 0.0
    %305 = vmatprep.subr.mxu0 0.0
    %306 = vmatpush1.msra.mxu0 0.0
    %307 = vmatprep.subr.mxu0 0.0
    %308 = vmatpush1.msra.mxu0 0.0
    %309 = vmatprep.subr.mxu0 0.0
    %310 = vmatpush1.msra.mxu0 0.0
    %311 = vmatprep.subr.mxu0 0.0
    %312 = vmatpush1.msra.mxu0 0.0
    %313 = vmatprep.subr.mxu0 0.0
    %314 = vmatpush1.msra.mxu0 0.0
    %315 = vmatprep.subr.mxu0 0.0
    %316 = vmatpush1.msra.mxu0 0.0
    %317 = vmatprep.subr.mxu0 0.0
    %318 = vmatpush1.msra.mxu0 0.0
    %319 = vmatprep.subr.mxu0 0.0
    %320 = vmatpush1.msra.mxu0 0.0
    %321 = vmatprep.subr.mxu0 0.0
    %322 = vmatpush1.msra.mxu0 0.0
    %323 = vmatprep.subr.mxu0 0.0
    %324 = vmatpush1.msra.mxu0 0.0
    %325 = vmatprep.subr.mxu0 0.0
    %326 = vmatpush1.msra.mxu0 0.0
    %327 = vmatprep.subr.mxu0 0.0
    %328 = vmatpush1.msra.mxu0 0.0
    %329 = vmatprep.subr.mxu0 0.0
    %330 = vmatpush1.msra.mxu0 0.0
    %331 = vmatprep.subr.mxu0 0.0
    %332 = vmatpush1.msra.mxu0 0.0
    %333 = vmatprep.mubr.f32.mxu0 0.0
    %334 = vmatmul.mubr.f32.gmra.mrb[0].mxu0 %v267
    %v335 = vpop.f32.mrb[0].mxu0
    %v336 = vadd.f32 %v264, %v335
    %v337 = vpop.f32.mrb[0].mxu0
    %338 = vdwg.mxu0
    %v339 = vxor.u32 %v336, 2147483648
    %v340 = vmul.f32 %v339, 1.442695
    %v341 = vpow.pop %v340
    %v342 = vadd.f32 %v341, 1.0
    %v343 = vrcp.pop %v342
    %v344 = vmul.f32 1.0, %v343
    %v347 = vunpack.c.l.s4 1966171168
    %v348 = vunpack.c.0.s8 %v347
    %v349 = vlaneseq
    %v350 = vshrl.u32 %v349, 7
    %v351 = vsub.s32 %v348, %v350
    %v352 = vrot.slane %v344, %v351
    %v353 = vcombine.high %v352, %v352
    %v355 = vunpack.c.l.s4 1966171168
    %v356 = vunpack.c.0.s8 %v355
    %v357 = vlaneseq
    %v358 = vshrl.u32 %v357, 7
    %v359 = vsub.s32 %v356, %v358
    %v360 = vrot.slane %v352, %v359
    %v362 = vunpack.c.l.s4 1966171168
    %v363 = vunpack.c.0.s8 %v362
    %v364 = vlaneseq
    %v365 = vshrl.u32 %v364, 7
    %v366 = vsub.s32 %v363, %v365
    %v367 = vrot.slane %v353, %v366
    %370 = vst [vmem:[#allocation10] sm:$0x1] %v360
    %371 = vst [vmem:[#allocation10 + $0x8] sm:$0x1] %v367
    %v372 = vld [vmem:[#allocation2 + $0x1] sm:$0x1]
    %v373 = vld [vmem:[#allocation2 + $0x9] sm:$0x1]
    %v376 = vrot.slane %v373, 7
    %v377 = vsel %vm109, %v376, %v372
    %v378 = vsel %vm111, %v377, 0
    %380 = vmatprep.subr.mxu0 0.0
    %381 = vmatpush1.msra.mxu0 %v85
    %382 = vmatprep.subr.mxu0 0.0
    %383 = vmatpush1.msra.mxu0 %v86
    %384 = vmatprep.subr.mxu0 0.0
    %385 = vmatpush1.msra.mxu0 0.0
    %386 = vmatprep.subr.mxu0 0.0
    %387 = vmatpush1.msra.mxu0 0.0
    %388 = vmatprep.subr.mxu0 0.0
    %389 = vmatpush1.msra.mxu0 0.0
    %390 = vmatprep.subr.mxu0 0.0
    %391 = vmatpush1.msra.mxu0 0.0
    %392 = vmatprep.subr.mxu0 0.0
    %393 = vmatpush1.msra.mxu0 0.0
    %394 = vmatprep.subr.mxu0 0.0
    %395 = vmatpush1.msra.mxu0 0.0
    %396 = vmatprep.subr.mxu0 0.0
    %397 = vmatpush1.msra.mxu0 0.0
    %398 = vmatprep.subr.mxu0 0.0
    %399 = vmatpush1.msra.mxu0 0.0
    %400 = vmatprep.subr.mxu0 0.0
    %401 = vmatpush1.msra.mxu0 0.0
    %402 = vmatprep.subr.mxu0 0.0
    %403 = vmatpush1.msra.mxu0 0.0
    %404 = vmatprep.subr.mxu0 0.0
    %405 = vmatpush1.msra.mxu0 0.0
    %406 = vmatprep.subr.mxu0 0.0
    %407 = vmatpush1.msra.mxu0 0.0
    %408 = vmatprep.subr.mxu0 0.0
    %409 = vmatpush1.msra.mxu0 0.0
    %410 = vmatprep.subr.mxu0 0.0
    %411 = vmatpush1.msra.mxu0 0.0
    %412 = vmatprep.subr.mxu0 0.0
    %413 = vmatpush1.msra.mxu0 0.0
    %414 = vmatprep.subr.mxu0 0.0
    %415 = vmatpush1.msra.mxu0 0.0
    %416 = vmatprep.subr.mxu0 0.0
    %417 = vmatpush1.msra.mxu0 0.0
    %418 = vmatprep.subr.mxu0 0.0
    %419 = vmatpush1.msra.mxu0 0.0
    %420 = vmatprep.subr.mxu0 0.0
    %421 = vmatpush1.msra.mxu0 0.0
    %422 = vmatprep.subr.mxu0 0.0
    %423 = vmatpush1.msra.mxu0 0.0
    %424 = vmatprep.subr.mxu0 0.0
    %425 = vmatpush1.msra.mxu0 0.0
    %426 = vmatprep.subr.mxu0 0.0
    %427 = vmatpush1.msra.mxu0 0.0
    %428 = vmatprep.subr.mxu0 0.0
    %429 = vmatpush1.msra.mxu0 0.0
    %430 = vmatprep.subr.mxu0 0.0
    %431 = vmatpush1.msra.mxu0 0.0
    %432 = vmatprep.subr.mxu0 0.0
    %433 = vmatpush1.msra.mxu0 0.0
    %434 = vmatprep.subr.mxu0 0.0
    %435 = vmatpush1.msra.mxu0 0.0
    %436 = vmatprep.subr.mxu0 0.0
    %437 = vmatpush1.msra.mxu0 0.0
    %438 = vmatprep.subr.mxu0 0.0
    %439 = vmatpush1.msra.mxu0 0.0
    %440 = vmatprep.subr.mxu0 0.0
    %441 = vmatpush1.msra.mxu0 0.0
    %442 = vmatprep.subr.mxu0 0.0
    %443 = vmatpush1.msra.mxu0 0.0
    %444 = vmatprep.mubr.f32.mxu0 0.0
    %445 = vmatmul.mubr.f32.gmra.mrb[0].mxu0 %v378
    %v446 = vpop.f32.mrb[0].mxu0
    %v447 = vadd.f32 %v104, %v446
    %v448 = vpop.f32.mrb[0].mxu0
    %449 = vdwg.mxu0
    %450 = vmatprep.subr.mxu0 0.0
    %451 = vmatpush1.msra.mxu0 %v87
    %452 = vmatprep.subr.mxu0 0.0
    %453 = vmatpush1.msra.mxu0 %v88
    %454 = vmatprep.subr.mxu0 0.0
    %455 = vmatpush1.msra.mxu0 %v89
    %456 = vmatprep.subr.mxu0 0.0
    %457 = vmatpush1.msra.mxu0 %v90
    %458 = vmatprep.subr.mxu0 0.0
    %459 = vmatpush1.msra.mxu0 0.0
    %460 = vmatprep.subr.mxu0 0.0
    %461 = vmatpush1.msra.mxu0 0.0
    %462 = vmatprep.subr.mxu0 0.0
    %463 = vmatpush1.msra.mxu0 0.0
    %464 = vmatprep.subr.mxu0 0.0
    %465 = vmatpush1.msra.mxu0 0.0
    %466 = vmatprep.subr.mxu0 0.0
    %467 = vmatpush1.msra.mxu0 0.0
    %468 = vmatprep.subr.mxu0 0.0
    %469 = vmatpush1.msra.mxu0 0.0
    %470 = vmatprep.subr.mxu0 0.0
    %471 = vmatpush1.msra.mxu0 0.0
    %472 = vmatprep.subr.mxu0 0.0
    %473 = vmatpush1.msra.mxu0 0.0
    %474 = vmatprep.subr.mxu0 0.0
    %475 = vmatpush1.msra.mxu0 0.0
    %476 = vmatprep.subr.mxu0 0.0
    %477 = vmatpush1.msra.mxu0 0.0
    %478 = vmatprep.subr.mxu0 0.0
    %479 = vmatpush1.msra.mxu0 0.0
    %480 = vmatprep.subr.mxu0 0.0
    %481 = vmatpush1.msra.mxu0 0.0
    %482 = vmatprep.subr.mxu0 0.0
    %483 = vmatpush1.msra.mxu0 0.0
    %484 = vmatprep.subr.mxu0 0.0
    %485 = vmatpush1.msra.mxu0 0.0
    %486 = vmatprep.subr.mxu0 0.0
    %487 = vmatpush1.msra.mxu0 0.0
    %488 = vmatprep.subr.mxu0 0.0
    %489 = vmatpush1.msra.mxu0 0.0
    %490 = vmatprep.subr.mxu0 0.0
    %491 = vmatpush1.msra.mxu0 0.0
    %492 = vmatprep.subr.mxu0 0.0
    %493 = vmatpush1.msra.mxu0 0.0
    %494 = vmatprep.subr.mxu0 0.0
    %495 = vmatpush1.msra.mxu0 0.0
    %496 = vmatprep.subr.mxu0 0.0
    %497 = vmatpush1.msra.mxu0 0.0
    %498 = vmatprep.subr.mxu0 0.0
    %499 = vmatpush1.msra.mxu0 0.0
    %500 = vmatprep.subr.mxu0 0.0
    %501 = vmatpush1.msra.mxu0 0.0
    %502 = vmatprep.subr.mxu0 0.0
    %503 = vmatpush1.msra.mxu0 0.0
    %504 = vmatprep.subr.mxu0 0.0
    %505 = vmatpush1.msra.mxu0 0.0
    %506 = vmatprep.subr.mxu0 0.0
    %507 = vmatpush1.msra.mxu0 0.0
    %508 = vmatprep.subr.mxu0 0.0
    %509 = vmatpush1.msra.mxu0 0.0
    %510 = vmatprep.subr.mxu0 0.0
    %511 = vmatpush1.msra.mxu0 0.0
    %512 = vmatprep.subr.mxu0 0.0
    %513 = vmatpush1.msra.mxu0 0.0
    %514 = vmatprep.mubr.f32.mxu0 0.0
    %515 = vmatmul.mubr.f32.gmra.mrb[0].mxu0 %v267
    %v516 = vpop.f32.mrb[0].mxu0
    %v517 = vadd.f32 0.0, %v516
    %v518 = vpop.f32.mrb[0].mxu0
    %519 = vdwg.mxu0
    %v520 = vadd.f32 %v447, %v517
    %v521 = vtanh.pop %v520
    %v523 = vsel %vm184, %v521, 0
    %525 = vmatprep.subr.mxu0 0.0
    %526 = vmatpush1.msra.mxu0 %v92
    %527 = vmatprep.subr.mxu0 0.0
    %528 = vmatpush1.msra.mxu0 %v93
    %529 = vmatprep.subr.mxu0 0.0
    %530 = vmatpush1.msra.mxu0 %v94
    %531 = vmatprep.subr.mxu0 0.0
    %532 = vmatpush1.msra.mxu0 %v95
    %533 = vmatprep.subr.mxu0 0.0
    %534 = vmatpush1.msra.mxu0 0.0
    %535 = vmatprep.subr.mxu0 0.0
    %536 = vmatpush1.msra.mxu0 0.0
    %537 = vmatprep.subr.mxu0 0.0
    %538 = vmatpush1.msra.mxu0 0.0
    %539 = vmatprep.subr.mxu0 0.0
    %540 = vmatpush1.msra.mxu0 0.0
    %541 = vmatprep.subr.mxu0 0.0
    %542 = vmatpush1.msra.mxu0 0.0
    %543 = vmatprep.subr.mxu0 0.0
    %544 = vmatpush1.msra.mxu0 0.0
    %545 = vmatprep.subr.mxu0 0.0
    %546 = vmatpush1.msra.mxu0 0.0
    %547 = vmatprep.subr.mxu0 0.0
    %548 = vmatpush1.msra.mxu0 0.0
    %549 = vmatprep.subr.mxu0 0.0
    %550 = vmatpush1.msra.mxu0 0.0
    %551 = vmatprep.subr.mxu0 0.0
    %552 = vmatpush1.msra.mxu0 0.0
    %553 = vmatprep.subr.mxu0 0.0
    %554 = vmatpush1.msra.mxu0 0.0
    %555 = vmatprep.subr.mxu0 0.0
    %556 = vmatpush1.msra.mxu0 0.0
    %557 = vmatprep.subr.mxu0 0.0
    %558 = vmatpush1.msra.mxu0 0.0
    %559 = vmatprep.subr.mxu0 0.0
    %560 = vmatpush1.msra.mxu0 0.0
    %561 = vmatprep.subr.mxu0 0.0
    %562 = vmatpush1.msra.mxu0 0.0
    %563 = vmatprep.subr.mxu0 0.0
    %564 = vmatpush1.msra.mxu0 0.0
    %565 = vmatprep.subr.mxu0 0.0
    %566 = vmatpush1.msra.mxu0 0.0
    %567 = vmatprep.subr.mxu0 0.0
    %568 = vmatpush1.msra.mxu0 0.0
    %569 = vmatprep.subr.mxu0 0.0
    %570 = vmatpush1.msra.mxu0 0.0
    %571 = vmatprep.subr.mxu0 0.0
    %572 = vmatpush1.msra.mxu0 0.0
    %573 = vmatprep.subr.mxu0 0.0
    %574 = vmatpush1.msra.mxu0 0.0
    %575 = vmatprep.subr.mxu0 0.0
    %576 = vmatpush1.msra.mxu0 0.0
    %577 = vmatprep.subr.mxu0 0.0
    %578 = vmatpush1.msra.mxu0 0.0
    %579 = vmatprep.subr.mxu0 0.0
    %580 = vmatpush1.msra.mxu0 0.0
    %581 = vmatprep.subr.mxu0 0.0
    %582 = vmatpush1.msra.mxu0 0.0
    %583 = vmatprep.subr.mxu0 0.0
    %584 = vmatpush1.msra.mxu0 0.0
    %585 = vmatprep.subr.mxu0 0.0
    %586 = vmatpush1.msra.mxu0 0.0
    %587 = vmatprep.subr.mxu0 0.0
    %588 = vmatpush1.msra.mxu0 0.0
    %589 = vmatprep.mubr.f32.mxu0 0.0
    %590 = vmatmul.mubr.f32.gmra.mrb[0].mxu0 %v523
    %v591 = vpop.f32.mrb[0].mxu0
    %v592 = vadd.f32 %v264, %v591
    %v593 = vpop.f32.mrb[0].mxu0
    %594 = vdwg.mxu0
    %v595 = vxor.u32 %v592, 2147483648
    %v596 = vmul.f32 %v595, 1.442695
    %v597 = vpow.pop %v596
    %v598 = vadd.f32 %v597, 1.0
    %v599 = vrcp.pop %v598
    %v600 = vmul.f32 1.0, %v599
    %v603 = vunpack.c.l.s4 1966171168
    %v604 = vunpack.c.0.s8 %v603
    %v605 = vlaneseq
    %v606 = vshrl.u32 %v605, 7
    %v607 = vsub.s32 %v604, %v606
    %v608 = vrot.slane %v600, %v607
    %v609 = vcombine.high %v608, %v608
    %v611 = vunpack.c.l.s4 1966171168
    %v612 = vunpack.c.0.s8 %v611
    %v613 = vlaneseq
    %v614 = vshrl.u32 %v613, 7
    %v615 = vsub.s32 %v612, %v614
    %v616 = vrot.slane %v608, %v615
    %v618 = vunpack.c.l.s4 1966171168
    %v619 = vunpack.c.0.s8 %v618
    %v620 = vlaneseq
    %v621 = vshrl.u32 %v620, 7
    %v622 = vsub.s32 %v619, %v621
    %v623 = vrot.slane %v609, %v622
    %626 = vst [vmem:[#allocation10 + $0x1] sm:$0x1] %v616
    %627 = vst [vmem:[#allocation10 + $0x9] sm:$0x1] %v623
    %v628 = vld [vmem:[#allocation2 + $0x2] sm:$0x1]
    %v629 = vld [vmem:[#allocation2 + $0xa] sm:$0x1]
    %v632 = vrot.slane %v629, 7
    %v633 = vsel %vm109, %v632, %v628
    %v634 = vsel %vm111, %v633, 0
    %636 = vmatprep.subr.mxu0 0.0
    %637 = vmatpush1.msra.mxu0 %v85
    %638 = vmatprep.subr.mxu0 0.0
    %639 = vmatpush1.msra.mxu0 %v86
    %640 = vmatprep.subr.mxu0 0.0
    %641 = vmatpush1.msra.mxu0 0.0
    %642 = vmatprep.subr.mxu0 0.0
    %643 = vmatpush1.msra.mxu0 0.0
    %644 = vmatprep.subr.mxu0 0.0
    %645 = vmatpush1.msra.mxu0 0.0
    %646 = vmatprep.subr.mxu0 0.0
    %647 = vmatpush1.msra.mxu0 0.0
    %648 = vmatprep.subr.mxu0 0.0
    %649 = vmatpush1.msra.mxu0 0.0
    %650 = vmatprep.subr.mxu0 0.0
    %651 = vmatpush1.msra.mxu0 0.0
    %652 = vmatprep.subr.mxu0 0.0
    %653 = vmatpush1.msra.mxu0 0.0
    %654 = vmatprep.subr.mxu0 0.0
    %655 = vmatpush1.msra.mxu0 0.0
    %656 = vmatprep.subr.mxu0 0.0
    %657 = vmatpush1.msra.mxu0 0.0
    %658 = vmatprep.subr.mxu0 0.0
    %659 = vmatpush1.msra.mxu0 0.0
    %660 = vmatprep.subr.mxu0 0.0
    %661 = vmatpush1.msra.mxu0 0.0
    %662 = vmatprep.subr.mxu0 0.0
    %663 = vmatpush1.msra.mxu0 0.0
    %664 = vmatprep.subr.mxu0 0.0
    %665 = vmatpush1.msra.mxu0 0.0
    %666 = vmatprep.subr.mxu0 0.0
    %667 = vmatpush1.msra.mxu0 0.0
    %668 = vmatprep.subr.mxu0 0.0
    %669 = vmatpush1.msra.mxu0 0.0
    %670 = vmatprep.subr.mxu0 0.0
    %671 = vmatpush1.msra.mxu0 0.0
    %672 = vmatprep.subr.mxu0 0.0
    %673 = vmatpush1.msra.mxu0 0.0
    %674 = vmatprep.subr.mxu0 0.0
    %675 = vmatpush1.msra.mxu0 0.0
    %676 = vmatprep.subr.mxu0 0.0
    %677 = vmatpush1.msra.mxu0 0.0
    %678 = vmatprep.subr.mxu0 0.0
    %679 = vmatpush1.msra.mxu0 0.0
    %680 = vmatprep.subr.mxu0 0.0
    %681 = vmatpush1.msra.mxu0 0.0
    %682 = vmatprep.subr.mxu0 0.0
    %683 = vmatpush1.msra.mxu0 0.0
    %684 = vmatprep.subr.mxu0 0.0
    %685 = vmatpush1.msra.mxu0 0.0
    %686 = vmatprep.subr.mxu0 0.0
    %687 = vmatpush1.msra.mxu0 0.0
    %688 = vmatprep.subr.mxu0 0.0
    %689 = vmatpush1.msra.mxu0 0.0
    %690 = vmatprep.subr.mxu0 0.0
    %691 = vmatpush1.msra.mxu0 0.0
    %692 = vmatprep.subr.mxu0 0.0
    %693 = vmatpush1.msra.mxu0 0.0
    %694 = vmatprep.subr.mxu0 0.0
    %695 = vmatpush1.msra.mxu0 0.0
    %696 = vmatprep.subr.mxu0 0.0
    %697 = vmatpush1.msra.mxu0 0.0
    %698 = vmatprep.subr.mxu0 0.0
    %699 = vmatpush1.msra.mxu0 0.0
    %700 = vmatprep.mubr.f32.mxu0 0.0
    %701 = vmatmul.mubr.f32.gmra.mrb[0].mxu0 %v634
    %v702 = vpop.f32.mrb[0].mxu0
    %v703 = vadd.f32 %v104, %v702
    %v704 = vpop.f32.mrb[0].mxu0
    %705 = vdwg.mxu0
    %706 = vmatprep.subr.mxu0 0.0
    %707 = vmatpush1.msra.mxu0 %v87
    %708 = vmatprep.subr.mxu0 0.0
    %709 = vmatpush1.msra.mxu0 %v88
    %710 = vmatprep.subr.mxu0 0.0
    %711 = vmatpush1.msra.mxu0 %v89
    %712 = vmatprep.subr.mxu0 0.0
    %713 = vmatpush1.msra.mxu0 %v90
    %714 = vmatprep.subr.mxu0 0.0
    %715 = vmatpush1.msra.mxu0 0.0
    %716 = vmatprep.subr.mxu0 0.0
    %717 = vmatpush1.msra.mxu0 0.0
    %718 = vmatprep.subr.mxu0 0.0
    %719 = vmatpush1.msra.mxu0 0.0
    %720 = vmatprep.subr.mxu0 0.0
    %721 = vmatpush1.msra.mxu0 0.0
    %722 = vmatprep.subr.mxu0 0.0
    %723 = vmatpush1.msra.mxu0 0.0
    %724 = vmatprep.subr.mxu0 0.0
    %725 = vmatpush1.msra.mxu0 0.0
    %726 = vmatprep.subr.mxu0 0.0
    %727 = vmatpush1.msra.mxu0 0.0
    %728 = vmatprep.subr.mxu0 0.0
    %729 = vmatpush1.msra.mxu0 0.0
    %730 = vmatprep.subr.mxu0 0.0
    %731 = vmatpush1.msra.mxu0 0.0
    %732 = vmatprep.subr.mxu0 0.0
    %733 = vmatpush1.msra.mxu0 0.0
    %734 = vmatprep.subr.mxu0 0.0
    %735 = vmatpush1.msra.mxu0 0.0
    %736 = vmatprep.subr.mxu0 0.0
    %737 = vmatpush1.msra.mxu0 0.0
    %738 = vmatprep.subr.mxu0 0.0
    %739 = vmatpush1.msra.mxu0 0.0
    %740 = vmatprep.subr.mxu0 0.0
    %741 = vmatpush1.msra.mxu0 0.0
    %742 = vmatprep.subr.mxu0 0.0
    %743 = vmatpush1.msra.mxu0 0.0
    %744 = vmatprep.subr.mxu0 0.0
    %745 = vmatpush1.msra.mxu0 0.0
    %746 = vmatprep.subr.mxu0 0.0
    %747 = vmatpush1.msra.mxu0 0.0
    %748 = vmatprep.subr.mxu0 0.0
    %749 = vmatpush1.msra.mxu0 0.0
    %750 = vmatprep.subr.mxu0 0.0
    %751 = vmatpush1.msra.mxu0 0.0
    %752 = vmatprep.subr.mxu0 0.0
    %753 = vmatpush1.msra.mxu0 0.0
    %754 = vmatprep.subr.mxu0 0.0
    %755 = vmatpush1.msra.mxu0 0.0
    %756 = vmatprep.subr.mxu0 0.0
    %757 = vmatpush1.msra.mxu0 0.0
    %758 = vmatprep.subr.mxu0 0.0
    %759 = vmatpush1.msra.mxu0 0.0
    %760 = vmatprep.subr.mxu0 0.0
    %761 = vmatpush1.msra.mxu0 0.0
    %762 = vmatprep.subr.mxu0 0.0
    %763 = vmatpush1.msra.mxu0 0.0
    %764 = vmatprep.subr.mxu0 0.0
    %765 = vmatpush1.msra.mxu0 0.0
    %766 = vmatprep.subr.mxu0 0.0
    %767 = vmatpush1.msra.mxu0 0.0
    %768 = vmatprep.subr.mxu0 0.0
    %769 = vmatpush1.msra.mxu0 0.0
    %770 = vmatprep.mubr.f32.mxu0 0.0
    %771 = vmatmul.mubr.f32.gmra.mrb[0].mxu0 %v523
    %v772 = vpop.f32.mrb[0].mxu0
    %v773 = vadd.f32 0.0, %v772
    %v774 = vpop.f32.mrb[0].mxu0
    %775 = vdwg.mxu0
    %v776 = vadd.f32 %v703, %v773
    %v777 = vtanh.pop %v776
    %v779 = vsel %vm184, %v777, 0
    %781 = vmatprep.subr.mxu0 0.0
    %782 = vmatpush1.msra.mxu0 %v92
    %783 = vmatprep.subr.mxu0 0.0
    %784 = vmatpush1.msra.mxu0 %v93
    %785 = vmatprep.subr.mxu0 0.0
    %786 = vmatpush1.msra.mxu0 %v94
    %787 = vmatprep.subr.mxu0 0.0
    %788 = vmatpush1.msra.mxu0 %v95
    %789 = vmatprep.subr.mxu0 0.0
    %790 = vmatpush1.msra.mxu0 0.0
    %791 = vmatprep.subr.mxu0 0.0
    %792 = vmatpush1.msra.mxu0 0.0
    %793 = vmatprep.subr.mxu0 0.0
    %794 = vmatpush1.msra.mxu0 0.0
    %795 = vmatprep.subr.mxu0 0.0
    %796 = vmatpush1.msra.mxu0 0.0
    %797 = vmatprep.subr.mxu0 0.0
    %798 = vmatpush1.msra.mxu0 0.0
    %799 = vmatprep.subr.mxu0 0.0
    %800 = vmatpush1.msra.mxu0 0.0
    %801 = vmatprep.subr.mxu0 0.0
    %802 = vmatpush1.msra.mxu0 0.0
    %803 = vmatprep.subr.mxu0 0.0
    %804 = vmatpush1.msra.mxu0 0.0
    %805 = vmatprep.subr.mxu0 0.0
    %806 = vmatpush1.msra.mxu0 0.0
    %807 = vmatprep.subr.mxu0 0.0
    %808 = vmatpush1.msra.mxu0 0.0
    %809 = vmatprep.subr.mxu0 0.0
    %810 = vmatpush1.msra.mxu0 0.0
    %811 = vmatprep.subr.mxu0 0.0
    %812 = vmatpush1.msra.mxu0 0.0
    %813 = vmatprep.subr.mxu0 0.0
    %814 = vmatpush1.msra.mxu0 0.0
    %815 = vmatprep.subr.mxu0 0.0
    %816 = vmatpush1.msra.mxu0 0.0
    %817 = vmatprep.subr.mxu0 0.0
    %818 = vmatpush1.msra.mxu0 0.0
    %819 = vmatprep.subr.mxu0 0.0
    %820 = vmatpush1.msra.mxu0 0.0
    %821 = vmatprep.subr.mxu0 0.0
    %822 = vmatpush1.msra.mxu0 0.0
    %823 = vmatprep.subr.mxu0 0.0
    %824 = vmatpush1.msra.mxu0 0.0
    %825 = vmatprep.subr.mxu0 0.0
    %826 = vmatpush1.msra.mxu0 0.0
    %827 = vmatprep.subr.mxu0 0.0
    %828 = vmatpush1.msra.mxu0 0.0
    %829 = vmatprep.subr.mxu0 0.0
    %830 = vmatpush1.msra.mxu0 0.0
    %831 = vmatprep.subr.mxu0 0.0
    %832 = vmatpush1.msra.mxu0 0.0
    %833 = vmatprep.subr.mxu0 0.0
    %834 = vmatpush1.msra.mxu0 0.0
    %835 = vmatprep.subr.mxu0 0.0
    %836 = vmatpush1.msra.mxu0 0.0
    %837 = vmatprep.subr.mxu0 0.0
    %838 = vmatpush1.msra.mxu0 0.0
    %839 = vmatprep.subr.mxu0 0.0
    %840 = vmatpush1.msra.mxu0 0.0
    %841 = vmatprep.subr.mxu0 0.0
    %842 = vmatpush1.msra.mxu0 0.0
    %843 = vmatprep.subr.mxu0 0.0
    %844 = vmatpush1.msra.mxu0 0.0
    %845 = vmatprep.mubr.f32.mxu0 0.0
    %846 = vmatmul.mubr.f32.gmra.mrb[0].mxu0 %v779
    %v847 = vpop.f32.mrb[0].mxu0
    %v848 = vadd.f32 %v264, %v847
    %v849 = vpop.f32.mrb[0].mxu0
    %850 = vdwg.mxu0
    %v851 = vxor.u32 %v848, 2147483648
    %v852 = vmul.f32 %v851, 1.442695
    %v853 = vpow.pop %v852
    %v854 = vadd.f32 %v853, 1.0
    %v855 = vrcp.pop %v854
    %v856 = vmul.f32 1.0, %v855
    %v859 = vunpack.c.l.s4 1966171168
    %v860 = vunpack.c.0.s8 %v859
    %v861 = vlaneseq
    %v862 = vshrl.u32 %v861, 7
    %v863 = vsub.s32 %v860, %v862
    %v864 = vrot.slane %v856, %v863
    %v865 = vcombine.high %v864, %v864
    %v867 = vunpack.c.l.s4 1966171168
    %v868 = vunpack.c.0.s8 %v867
    %v869 = vlaneseq
    %v870 = vshrl.u32 %v869, 7
    %v871 = vsub.s32 %v868, %v870
    %v872 = vrot.slane %v864, %v871
    %v874 = vunpack.c.l.s4 1966171168
    %v875 = vunpack.c.0.s8 %v874
    %v876 = vlaneseq
    %v877 = vshrl.u32 %v876, 7
    %v878 = vsub.s32 %v875, %v877
    %v879 = vrot.slane %v865, %v878
    %882 = vst [vmem:[#allocation10 + $0x2] sm:$0x1] %v872
    %883 = vst [vmem:[#allocation10 + $0xa] sm:$0x1] %v879
    %v884 = vld [vmem:[#allocation2 + $0x3] sm:$0x1]
    %v885 = vld [vmem:[#allocation2 + $0xb] sm:$0x1]
    %v888 = vrot.slane %v885, 7
    %v889 = vsel %vm109, %v888, %v884
    %v890 = vsel %vm111, %v889, 0
    %892 = vmatprep.subr.mxu0 0.0
    %893 = vmatpush1.msra.mxu0 %v85
    %894 = vmatprep.subr.mxu0 0.0
    %895 = vmatpush1.msra.mxu0 %v86
    %896 = vmatprep.subr.mxu0 0.0
    %897 = vmatpush1.msra.mxu0 0.0
    %898 = vmatprep.subr.mxu0 0.0
    %899 = vmatpush1.msra.mxu0 0.0
    %900 = vmatprep.subr.mxu0 0.0
    %901 = vmatpush1.msra.mxu0 0.0
    %902 = vmatprep.subr.mxu0 0.0
    %903 = vmatpush1.msra.mxu0 0.0
    %904 = vmatprep.subr.mxu0 0.0
    %905 = vmatpush1.msra.mxu0 0.0
    %906 = vmatprep.subr.mxu0 0.0
    %907 = vmatpush1.msra.mxu0 0.0
    %908 = vmatprep.subr.mxu0 0.0
    %909 = vmatpush1.msra.mxu0 0.0
    %910 = vmatprep.subr.mxu0 0.0
    %911 = vmatpush1.msra.mxu0 0.0
    %912 = vmatprep.subr.mxu0 0.0
    %913 = vmatpush1.msra.mxu0 0.0
    %914 = vmatprep.subr.mxu0 0.0
    %915 = vmatpush1.msra.mxu0 0.0
    %916 = vmatprep.subr.mxu0 0.0
    %917 = vmatpush1.msra.mxu0 0.0
    %918 = vmatprep.subr.mxu0 0.0
    %919 = vmatpush1.msra.mxu0 0.0
    %920 = vmatprep.subr.mxu0 0.0
    %921 = vmatpush1.msra.mxu0 0.0
    %922 = vmatprep.subr.mxu0 0.0
    %923 = vmatpush1.msra.mxu0 0.0
    %924 = vmatprep.subr.mxu0 0.0
    %925 = vmatpush1.msra.mxu0 0.0
    %926 = vmatprep.subr.mxu0 0.0
    %927 = vmatpush1.msra.mxu0 0.0
    %928 = vmatprep.subr.mxu0 0.0
    %929 = vmatpush1.msra.mxu0 0.0
    %930 = vmatprep.subr.mxu0 0.0
    %931 = vmatpush1.msra.mxu0 0.0
    %932 = vmatprep.subr.mxu0 0.0
    %933 = vmatpush1.msra.mxu0 0.0
    %934 = vmatprep.subr.mxu0 0.0
    %935 = vmatpush1.msra.mxu0 0.0
    %936 = vmatprep.subr.mxu0 0.0
    %937 = vmatpush1.msra.mxu0 0.0
    %938 = vmatprep.subr.mxu0 0.0
    %939 = vmatpush1.msra.mxu0 0.0
    %940 = vmatprep.subr.mxu0 0.0
    %941 = vmatpush1.msra.mxu0 0.0
    %942 = vmatprep.subr.mxu0 0.0
    %943 = vmatpush1.msra.mxu0 0.0
    %944 = vmatprep.subr.mxu0 0.0
    %945 = vmatpush1.msra.mxu0 0.0
    %946 = vmatprep.subr.mxu0 0.0
    %947 = vmatpush1.msra.mxu0 0.0
    %948 = vmatprep.subr.mxu0 0.0
    %949 = vmatpush1.msra.mxu0 0.0
    %950 = vmatprep.subr.mxu0 0.0
    %951 = vmatpush1.msra.mxu0 0.0
    %952 = vmatprep.subr.mxu0 0.0
    %953 = vmatpush1.msra.mxu0 0.0
    %954 = vmatprep.subr.mxu0 0.0
    %955 = vmatpush1.msra.mxu0 0.0
    %956 = vmatprep.mubr.f32.mxu0 0.0
    %957 = vmatmul.mubr.f32.gmra.mrb[0].mxu0 %v890
    %v958 = vpop.f32.mrb[0].mxu0
    %v959 = vadd.f32 %v104, %v958
    %v960 = vpop.f32.mrb[0].mxu0
    %961 = vdwg.mxu0
    %962 = vmatprep.subr.mxu0 0.0
    %963 = vmatpush1.msra.mxu0 %v87
    %964 = vmatprep.subr.mxu0 0.0
    %965 = vmatpush1.msra.mxu0 %v88
    %966 = vmatprep.subr.mxu0 0.0
    %967 = vmatpush1.msra.mxu0 %v89
    %968 = vmatprep.subr.mxu0 0.0
    %969 = vmatpush1.msra.mxu0 %v90
    %970 = vmatprep.subr.mxu0 0.0
    %971 = vmatpush1.msra.mxu0 0.0
    %972 = vmatprep.subr.mxu0 0.0
    %973 = vmatpush1.msra.mxu0 0.0
    %974 = vmatprep.subr.mxu0 0.0
    %975 = vmatpush1.msra.mxu0 0.0
    %976 = vmatprep.subr.mxu0 0.0
    %977 = vmatpush1.msra.mxu0 0.0
    %978 = vmatprep.subr.mxu0 0.0
    %979 = vmatpush1.msra.mxu0 0.0
    %980 = vmatprep.subr.mxu0 0.0
    %981 = vmatpush1.msra.mxu0 0.0
    %982 = vmatprep.subr.mxu0 0.0
    %983 = vmatpush1.msra.mxu0 0.0
    %984 = vmatprep.subr.mxu0 0.0
    %985 = vmatpush1.msra.mxu0 0.0
    %986 = vmatprep.subr.mxu0 0.0
    %987 = vmatpush1.msra.mxu0 0.0
    %988 = vmatprep.subr.mxu0 0.0
    %989 = vmatpush1.msra.mxu0 0.0
    %990 = vmatprep.subr.mxu0 0.0
    %991 = vmatpush1.msra.mxu0 0.0
    %992 = vmatprep.subr.mxu0 0.0
    %993 = vmatpush1.msra.mxu0 0.0
    %994 = vmatprep.subr.mxu0 0.0
    %995 = vmatpush1.msra.mxu0 0.0
    %996 = vmatprep.subr.mxu0 0.0
    %997 = vmatpush1.msra.mxu0 0.0
    %998 = vmatprep.subr.mxu0 0.0
    %999 = vmatpush1.msra.mxu0 0.0
    %1000 = vmatprep.subr.mxu0 0.0
    %1001 = vmatpush1.msra.mxu0 0.0
    %1002 = vmatprep.subr.mxu0 0.0
    %1003 = vmatpush1.msra.mxu0 0.0
    %1004 = vmatprep.subr.mxu0 0.0
    %1005 = vmatpush1.msra.mxu0 0.0
    %1006 = vmatprep.subr.mxu0 0.0
    %1007 = vmatpush1.msra.mxu0 0.0
    %1008 = vmatprep.subr.mxu0 0.0
    %1009 = vmatpush1.msra.mxu0 0.0
    %1010 = vmatprep.subr.mxu0 0.0
    %1011 = vmatpush1.msra.mxu0 0.0
    %1012 = vmatprep.subr.mxu0 0.0
    %1013 = vmatpush1.msra.mxu0 0.0
    %1014 = vmatprep.subr.mxu0 0.0
    %1015 = vmatpush1.msra.mxu0 0.0
    %1016 = vmatprep.subr.mxu0 0.0
    %1017 = vmatpush1.msra.mxu0 0.0
    %1018 = vmatprep.subr.mxu0 0.0
    %1019 = vmatpush1.msra.mxu0 0.0
    %1020 = vmatprep.subr.mxu0 0.0
    %1021 = vmatpush1.msra.mxu0 0.0
    %1022 = vmatprep.subr.mxu0 0.0
    %1023 = vmatpush1.msra.mxu0 0.0
    %1024 = vmatprep.subr.mxu0 0.0
    %1025 = vmatpush1.msra.mxu0 0.0
    %1026 = vmatprep.mubr.f32.mxu0 0.0
    %1027 = vmatmul.mubr.f32.gmra.mrb[0].mxu0 %v779
    %v1028 = vpop.f32.mrb[0].mxu0
    %v1029 = vadd.f32 0.0, %v1028
    %v1030 = vpop.f32.mrb[0].mxu0
    %1031 = vdwg.mxu0
    %v1032 = vadd.f32 %v959, %v1029
    %v1033 = vtanh.pop %v1032
    %v1035 = vsel %vm184, %v1033, 0
    %1037 = vmatprep.subr.mxu0 0.0
    %1038 = vmatpush1.msra.mxu0 %v92
    %1039 = vmatprep.subr.mxu0 0.0
    %1040 = vmatpush1.msra.mxu0 %v93
    %1041 = vmatprep.subr.mxu0 0.0
    %1042 = vmatpush1.msra.mxu0 %v94
    %1043 = vmatprep.subr.mxu0 0.0
    %1044 = vmatpush1.msra.mxu0 %v95
    %1045 = vmatprep.subr.mxu0 0.0
    %1046 = vmatpush1.msra.mxu0 0.0
    %1047 = vmatprep.subr.mxu0 0.0
    %1048 = vmatpush1.msra.mxu0 0.0
    %1049 = vmatprep.subr.mxu0 0.0
    %1050 = vmatpush1.msra.mxu0 0.0
    %1051 = vmatprep.subr.mxu0 0.0
    %1052 = vmatpush1.msra.mxu0 0.0
    %1053 = vmatprep.subr.mxu0 0.0
    %1054 = vmatpush1.msra.mxu0 0.0
    %1055 = vmatprep.subr.mxu0 0.0
    %1056 = vmatpush1.msra.mxu0 0.0
    %1057 = vmatprep.subr.mxu0 0.0
    %1058 = vmatpush1.msra.mxu0 0.0
    %1059 = vmatprep.subr.mxu0 0.0
    %1060 = vmatpush1.msra.mxu0 0.0
    %1061 = vmatprep.subr.mxu0 0.0
    %1062 = vmatpush1.msra.mxu0 0.0
    %1063 = vmatprep.subr.mxu0 0.0
    %1064 = vmatpush1.msra.mxu0 0.0
    %1065 = vmatprep.subr.mxu0 0.0
    %1066 = vmatpush1.msra.mxu0 0.0
    %1067 = vmatprep.subr.mxu0 0.0
    %1068 = vmatpush1.msra.mxu0 0.0
    %1069 = vmatprep.subr.mxu0 0.0
    %1070 = vmatpush1.msra.mxu0 0.0
    %1071 = vmatprep.subr.mxu0 0.0
    %1072 = vmatpush1.msra.mxu0 0.0
    %1073 = vmatprep.subr.mxu0 0.0
    %1074 = vmatpush1.msra.mxu0 0.0
    %1075 = vmatprep.subr.mxu0 0.0
    %1076 = vmatpush1.msra.mxu0 0.0
    %1077 = vmatprep.subr.mxu0 0.0
    %1078 = vmatpush1.msra.mxu0 0.0
    %1079 = vmatprep.subr.mxu0 0.0
    %1080 = vmatpush1.msra.mxu0 0.0
    %1081 = vmatprep.subr.mxu0 0.0
    %1082 = vmatpush1.msra.mxu0 0.0
    %1083 = vmatprep.subr.mxu0 0.0
    %1084 = vmatpush1.msra.mxu0 0.0
    %1085 = vmatprep.subr.mxu0 0.0
    %1086 = vmatpush1.msra.mxu0 0.0
    %1087 = vmatprep.subr.mxu0 0.0
    %1088 = vmatpush1.msra.mxu0 0.0
    %1089 = vmatprep.subr.mxu0 0.0
    %1090 = vmatpush1.msra.mxu0 0.0
    %1091 = vmatprep.subr.mxu0 0.0
    %1092 = vmatpush1.msra.mxu0 0.0
    %1093 = vmatprep.subr.mxu0 0.0
    %1094 = vmatpush1.msra.mxu0 0.0
    %1095 = vmatprep.subr.mxu0 0.0
    %1096 = vmatpush1.msra.mxu0 0.0
    %1097 = vmatprep.subr.mxu0 0.0
    %1098 = vmatpush1.msra.mxu0 0.0
    %1099 = vmatprep.subr.mxu0 0.0
    %1100 = vmatpush1.msra.mxu0 0.0
    %1101 = vmatprep.mubr.f32.mxu0 0.0
    %1102 = vmatmul.mubr.f32.gmra.mrb[0].mxu0 %v1035
    %v1103 = vpop.f32.mrb[0].mxu0
    %v1104 = vadd.f32 %v264, %v1103
    %v1105 = vpop.f32.mrb[0].mxu0
    %1106 = vdwg.mxu0
    %v1107 = vxor.u32 %v1104, 2147483648
    %v1108 = vmul.f32 %v1107, 1.442695
    %v1109 = vpow.pop %v1108
    %v1110 = vadd.f32 %v1109, 1.0
    %v1111 = vrcp.pop %v1110
    %v1112 = vmul.f32 1.0, %v1111
    %v1115 = vunpack.c.l.s4 1966171168
    %v1116 = vunpack.c.0.s8 %v1115
    %v1117 = vlaneseq
    %v1118 = vshrl.u32 %v1117, 7
    %v1119 = vsub.s32 %v1116, %v1118
    %v1120 = vrot.slane %v1112, %v1119
    %v1121 = vcombine.high %v1120, %v1120
    %v1123 = vunpack.c.l.s4 1966171168
    %v1124 = vunpack.c.0.s8 %v1123
    %v1125 = vlaneseq
    %v1126 = vshrl.u32 %v1125, 7
    %v1127 = vsub.s32 %v1124, %v1126
    %v1128 = vrot.slane %v1120, %v1127
    %v1130 = vunpack.c.l.s4 1966171168
    %v1131 = vunpack.c.0.s8 %v1130
    %v1132 = vlaneseq
    %v1133 = vshrl.u32 %v1132, 7
    %v1134 = vsub.s32 %v1131, %v1133
    %v1135 = vrot.slane %v1121, %v1134
    %1138 = vst [vmem:[#allocation10 + $0x3] sm:$0x1] %v1128
    %1139 = vst [vmem:[#allocation10 + $0xb] sm:$0x1] %v1135
    %v1140 = vld [vmem:[#allocation2 + $0x4] sm:$0x1]
    %v1141 = vld [vmem:[#allocation2 + $0xc] sm:$0x1]
    %v1144 = vrot.slane %v1141, 7
    %v1145 = vsel %vm109, %v1144, %v1140
    %v1146 = vsel %vm111, %v1145, 0
    %1148 = vmatprep.subr.mxu0 0.0
    %1149 = vmatpush1.msra.mxu0 %v85
    %1150 = vmatprep.subr.mxu0 0.0
    %1151 = vmatpush1.msra.mxu0 %v86
    %1152 = vmatprep.subr.mxu0 0.0
    %1153 = vmatpush1.msra.mxu0 0.0
    %1154 = vmatprep.subr.mxu0 0.0
    %1155 = vmatpush1.msra.mxu0 0.0
    %1156 = vmatprep.subr.mxu0 0.0
    %1157 = vmatpush1.msra.mxu0 0.0
    %1158 = vmatprep.subr.mxu0 0.0
    %1159 = vmatpush1.msra.mxu0 0.0
    %1160 = vmatprep.subr.mxu0 0.0
    %1161 = vmatpush1.msra.mxu0 0.0
    %1162 = vmatprep.subr.mxu0 0.0
    %1163 = vmatpush1.msra.mxu0 0.0
    %1164 = vmatprep.subr.mxu0 0.0
    %1165 = vmatpush1.msra.mxu0 0.0
    %1166 = vmatprep.subr.mxu0 0.0
    %1167 = vmatpush1.msra.mxu0 0.0
    %1168 = vmatprep.subr.mxu0 0.0
    %1169 = vmatpush1.msra.mxu0 0.0
    %1170 = vmatprep.subr.mxu0 0.0
    %1171 = vmatpush1.msra.mxu0 0.0
    %1172 = vmatprep.subr.mxu0 0.0
    %1173 = vmatpush1.msra.mxu0 0.0
    %1174 = vmatprep.subr.mxu0 0.0
    %1175 = vmatpush1.msra.mxu0 0.0
    %1176 = vmatprep.subr.mxu0 0.0
    %1177 = vmatpush1.msra.mxu0 0.0
    %1178 = vmatprep.subr.mxu0 0.0
    %1179 = vmatpush1.msra.mxu0 0.0
    %1180 = vmatprep.subr.mxu0 0.0
    %1181 = vmatpush1.msra.mxu0 0.0
    %1182 = vmatprep.subr.mxu0 0.0
    %1183 = vmatpush1.msra.mxu0 0.0
    %1184 = vmatprep.subr.mxu0 0.0
    %1185 = vmatpush1.msra.mxu0 0.0
    %1186 = vmatprep.subr.mxu0 0.0
    %1187 = vmatpush1.msra.mxu0 0.0
    %1188 = vmatprep.subr.mxu0 0.0
    %1189 = vmatpush1.msra.mxu0 0.0
    %1190 = vmatprep.subr.mxu0 0.0
    %1191 = vmatpush1.msra.mxu0 0.0
    %1192 = vmatprep.subr.mxu0 0.0
    %1193 = vmatpush1.msra.mxu0 0.0
    %1194 = vmatprep.subr.mxu0 0.0
    %1195 = vmatpush1.msra.mxu0 0.0
    %1196 = vmatprep.subr.mxu0 0.0
    %1197 = vmatpush1.msra.mxu0 0.0
    %1198 = vmatprep.subr.mxu0 0.0
    %1199 = vmatpush1.msra.mxu0 0.0
    %1200 = vmatprep.subr.mxu0 0.0
    %1201 = vmatpush1.msra.mxu0 0.0
    %1202 = vmatprep.subr.mxu0 0.0
    %1203 = vmatpush1.msra.mxu0 0.0
    %1204 = vmatprep.subr.mxu0 0.0
    %1205 = vmatpush1.msra.mxu0 0.0
    %1206 = vmatprep.subr.mxu0 0.0
    %1207 = vmatpush1.msra.mxu0 0.0
    %1208 = vmatprep.subr.mxu0 0.0
    %1209 = vmatpush1.msra.mxu0 0.0
    %1210 = vmatprep.subr.mxu0 0.0
    %1211 = vmatpush1.msra.mxu0 0.0
    %1212 = vmatprep.mubr.f32.mxu0 0.0
    %1213 = vmatmul.mubr.f32.gmra.mrb[0].mxu0 %v1146
    %v1214 = vpop.f32.mrb[0].mxu0
    %v1215 = vadd.f32 %v104, %v1214
    %v1216 = vpop.f32.mrb[0].mxu0
    %1217 = vdwg.mxu0
    %1218 = vmatprep.subr.mxu0 0.0
    %1219 = vmatpush1.msra.mxu0 %v87
    %1220 = vmatprep.subr.mxu0 0.0
    %1221 = vmatpush1.msra.mxu0 %v88
    %1222 = vmatprep.subr.mxu0 0.0
    %1223 = vmatpush1.msra.mxu0 %v89
    %1224 = vmatprep.subr.mxu0 0.0
    %1225 = vmatpush1.msra.mxu0 %v90
    %1226 = vmatprep.subr.mxu0 0.0
    %1227 = vmatpush1.msra.mxu0 0.0
    %1228 = vmatprep.subr.mxu0 0.0
    %1229 = vmatpush1.msra.mxu0 0.0
    %1230 = vmatprep.subr.mxu0 0.0
    %1231 = vmatpush1.msra.mxu0 0.0
    %1232 = vmatprep.subr.mxu0 0.0
    %1233 = vmatpush1.msra.mxu0 0.0
    %1234 = vmatprep.subr.mxu0 0.0
    %1235 = vmatpush1.msra.mxu0 0.0
    %1236 = vmatprep.subr.mxu0 0.0
    %1237 = vmatpush1.msra.mxu0 0.0
    %1238 = vmatprep.subr.mxu0 0.0
    %1239 = vmatpush1.msra.mxu0 0.0
    %1240 = vmatprep.subr.mxu0 0.0
    %1241 = vmatpush1.msra.mxu0 0.0
    %1242 = vmatprep.subr.mxu0 0.0
    %1243 = vmatpush1.msra.mxu0 0.0
    %1244 = vmatprep.subr.mxu0 0.0
    %1245 = vmatpush1.msra.mxu0 0.0
    %1246 = vmatprep.subr.mxu0 0.0
    %1247 = vmatpush1.msra.mxu0 0.0
    %1248 = vmatprep.subr.mxu0 0.0
    %1249 = vmatpush1.msra.mxu0 0.0
    %1250 = vmatprep.subr.mxu0 0.0
    %1251 = vmatpush1.msra.mxu0 0.0
    %1252 = vmatprep.subr.mxu0 0.0
    %1253 = vmatpush1.msra.mxu0 0.0
    %1254 = vmatprep.subr.mxu0 0.0
    %1255 = vmatpush1.msra.mxu0 0.0
    %1256 = vmatprep.subr.mxu0 0.0
    %1257 = vmatpush1.msra.mxu0 0.0
    %1258 = vmatprep.subr.mxu0 0.0
    %1259 = vmatpush1.msra.mxu0 0.0
    %1260 = vmatprep.subr.mxu0 0.0
    %1261 = vmatpush1.msra.mxu0 0.0
    %1262 = vmatprep.subr.mxu0 0.0
    %1263 = vmatpush1.msra.mxu0 0.0
    %1264 = vmatprep.subr.mxu0 0.0
    %1265 = vmatpush1.msra.mxu0 0.0
    %1266 = vmatprep.subr.mxu0 0.0
    %1267 = vmatpush1.msra.mxu0 0.0
    %1268 = vmatprep.subr.mxu0 0.0
    %1269 = vmatpush1.msra.mxu0 0.0
    %1270 = vmatprep.subr.mxu0 0.0
    %1271 = vmatpush1.msra.mxu0 0.0
    %1272 = vmatprep.subr.mxu0 0.0
    %1273 = vmatpush1.msra.mxu0 0.0
    %1274 = vmatprep.subr.mxu0 0.0
    %1275 = vmatpush1.msra.mxu0 0.0
    %1276 = vmatprep.subr.mxu0 0.0
    %1277 = vmatpush1.msra.mxu0 0.0
    %1278 = vmatprep.subr.mxu0 0.0
    %1279 = vmatpush1.msra.mxu0 0.0
    %1280 = vmatprep.subr.mxu0 0.0
    %1281 = vmatpush1.msra.mxu0 0.0
    %1282 = vmatprep.mubr.f32.mxu0 0.0
    %1283 = vmatmul.mubr.f32.gmra.mrb[0].mxu0 %v1035
    %v1284 = vpop.f32.mrb[0].mxu0
    %v1285 = vadd.f32 0.0, %v1284
    %v1286 = vpop.f32.mrb[0].mxu0
    %1287 = vdwg.mxu0
    %v1288 = vadd.f32 %v1215, %v1285
    %v1289 = vtanh.pop %v1288
    %v1291 = vsel %vm184, %v1289, 0
    %1293 = vmatprep.subr.mxu0 0.0
    %1294 = vmatpush1.msra.mxu0 %v92
    %1295 = vmatprep.subr.mxu0 0.0
    %1296 = vmatpush1.msra.mxu0 %v93
    %1297 = vmatprep.subr.mxu0 0.0
    %1298 = vmatpush1.msra.mxu0 %v94
    %1299 = vmatprep.subr.mxu0 0.0
    %1300 = vmatpush1.msra.mxu0 %v95
    %1301 = vmatprep.subr.mxu0 0.0
    %1302 = vmatpush1.msra.mxu0 0.0
    %1303 = vmatprep.subr.mxu0 0.0
    %1304 = vmatpush1.msra.mxu0 0.0
    %1305 = vmatprep.subr.mxu0 0.0
    %1306 = vmatpush1.msra.mxu0 0.0
    %1307 = vmatprep.subr.mxu0 0.0
    %1308 = vmatpush1.msra.mxu0 0.0
    %1309 = vmatprep.subr.mxu0 0.0
    %1310 = vmatpush1.msra.mxu0 0.0
    %1311 = vmatprep.subr.mxu0 0.0
    %1312 = vmatpush1.msra.mxu0 0.0
    %1313 = vmatprep.subr.mxu0 0.0
    %1314 = vmatpush1.msra.mxu0 0.0
    %1315 = vmatprep.subr.mxu0 0.0
    %1316 = vmatpush1.msra.mxu0 0.0
    %1317 = vmatprep.subr.mxu0 0.0
    %1318 = vmatpush1.msra.mxu0 0.0
    %1319 = vmatprep.subr.mxu0 0.0
    %1320 = vmatpush1.msra.mxu0 0.0
    %1321 = vmatprep.subr.mxu0 0.0
    %1322 = vmatpush1.msra.mxu0 0.0
    %1323 = vmatprep.subr.mxu0 0.0
    %1324 = vmatpush1.msra.mxu0 0.0
    %1325 = vmatprep.subr.mxu0 0.0
    %1326 = vmatpush1.msra.mxu0 0.0
    %1327 = vmatprep.subr.mxu0 0.0
    %1328 = vmatpush1.msra.mxu0 0.0
    %1329 = vmatprep.subr.mxu0 0.0
    %1330 = vmatpush1.msra.mxu0 0.0
    %1331 = vmatprep.subr.mxu0 0.0
    %1332 = vmatpush1.msra.mxu0 0.0
    %1333 = vmatprep.subr.mxu0 0.0
    %1334 = vmatpush1.msra.mxu0 0.0
    %1335 = vmatprep.subr.mxu0 0.0
    %1336 = vmatpush1.msra.mxu0 0.0
    %1337 = vmatprep.subr.mxu0 0.0
    %1338 = vmatpush1.msra.mxu0 0.0
    %1339 = vmatprep.subr.mxu0 0.0
    %1340 = vmatpush1.msra.mxu0 0.0
    %1341 = vmatprep.subr.mxu0 0.0
    %1342 = vmatpush1.msra.mxu0 0.0
    %1343 = vmatprep.subr.mxu0 0.0
    %1344 = vmatpush1.msra.mxu0 0.0
    %1345 = vmatprep.subr.mxu0 0.0
    %1346 = vmatpush1.msra.mxu0 0.0
    %1347 = vmatprep.subr.mxu0 0.0
    %1348 = vmatpush1.msra.mxu0 0.0
    %1349 = vmatprep.subr.mxu0 0.0
    %1350 = vmatpush1.msra.mxu0 0.0
    %1351 = vmatprep.subr.mxu0 0.0
    %1352 = vmatpush1.msra.mxu0 0.0
    %1353 = vmatprep.subr.mxu0 0.0
    %1354 = vmatpush1.msra.mxu0 0.0
    %1355 = vmatprep.subr.mxu0 0.0
    %1356 = vmatpush1.msra.mxu0 0.0
    %1357 = vmatprep.mubr.f32.mxu0 0.0
    %1358 = vmatmul.mubr.f32.gmra.mrb[0].mxu0 %v1291
    %v1359 = vpop.f32.mrb[0].mxu0
    %v1360 = vadd.f32 %v264, %v1359
    %v1361 = vpop.f32.mrb[0].mxu0
    %1362 = vdwg.mxu0
    %v1363 = vxor.u32 %v1360, 2147483648
    %v1364 = vmul.f32 %v1363, 1.442695
    %v1365 = vpow.pop %v1364
    %v1366 = vadd.f32 %v1365, 1.0
    %v1367 = vrcp.pop %v1366
    %v1368 = vmul.f32 1.0, %v1367
    %v1371 = vunpack.c.l.s4 1966171168
    %v1372 = vunpack.c.0.s8 %v1371
    %v1373 = vlaneseq
    %v1374 = vshrl.u32 %v1373, 7
    %v1375 = vsub.s32 %v1372, %v1374
    %v1376 = vrot.slane %v1368, %v1375
    %v1377 = vcombine.high %v1376, %v1376
    %v1379 = vunpack.c.l.s4 1966171168
    %v1380 = vunpack.c.0.s8 %v1379
    %v1381 = vlaneseq
    %v1382 = vshrl.u32 %v1381, 7
    %v1383 = vsub.s32 %v1380, %v1382
    %v1384 = vrot.slane %v1376, %v1383
    %v1386 = vunpack.c.l.s4 1966171168
    %v1387 = vunpack.c.0.s8 %v1386
    %v1388 = vlaneseq
    %v1389 = vshrl.u32 %v1388, 7
    %v1390 = vsub.s32 %v1387, %v1389
    %v1391 = vrot.slane %v1377, %v1390
    %1394 = vst [vmem:[#allocation10 + $0x4] sm:$0x1] %v1384
    %1395 = vst [vmem:[#allocation10 + $0xc] sm:$0x1] %v1391
    %v1396 = vld [vmem:[#allocation2 + $0x5] sm:$0x1]
    %v1397 = vld [vmem:[#allocation2 + $0xd] sm:$0x1]
    %v1400 = vrot.slane %v1397, 7
    %v1401 = vsel %vm109, %v1400, %v1396
    %v1402 = vsel %vm111, %v1401, 0
    %1404 = vmatprep.subr.mxu0 0.0
    %1405 = vmatpush1.msra.mxu0 %v85
    %1406 = vmatprep.subr.mxu0 0.0
    %1407 = vmatpush1.msra.mxu0 %v86
    %1408 = vmatprep.subr.mxu0 0.0
    %1409 = vmatpush1.msra.mxu0 0.0
    %1410 = vmatprep.subr.mxu0 0.0
    %1411 = vmatpush1.msra.mxu0 0.0
    %1412 = vmatprep.subr.mxu0 0.0
    %1413 = vmatpush1.msra.mxu0 0.0
    %1414 = vmatprep.subr.mxu0 0.0
    %1415 = vmatpush1.msra.mxu0 0.0
    %1416 = vmatprep.subr.mxu0 0.0
    %1417 = vmatpush1.msra.mxu0 0.0
    %1418 = vmatprep.subr.mxu0 0.0
    %1419 = vmatpush1.msra.mxu0 0.0
    %1420 = vmatprep.subr.mxu0 0.0
    %1421 = vmatpush1.msra.mxu0 0.0
    %1422 = vmatprep.subr.mxu0 0.0
    %1423 = vmatpush1.msra.mxu0 0.0
    %1424 = vmatprep.subr.mxu0 0.0
    %1425 = vmatpush1.msra.mxu0 0.0
    %1426 = vmatprep.subr.mxu0 0.0
    %1427 = vmatpush1.msra.mxu0 0.0
    %1428 = vmatprep.subr.mxu0 0.0
    %1429 = vmatpush1.msra.mxu0 0.0
    %1430 = vmatprep.subr.mxu0 0.0
    %1431 = vmatpush1.msra.mxu0 0.0
    %1432 = vmatprep.subr.mxu0 0.0
    %1433 = vmatpush1.msra.mxu0 0.0
    %1434 = vmatprep.subr.mxu0 0.0
    %1435 = vmatpush1.msra.mxu0 0.0
    %1436 = vmatprep.subr.mxu0 0.0
    %1437 = vmatpush1.msra.mxu0 0.0
    %1438 = vmatprep.subr.mxu0 0.0
    %1439 = vmatpush1.msra.mxu0 0.0
    %1440 = vmatprep.subr.mxu0 0.0
    %1441 = vmatpush1.msra.mxu0 0.0
    %1442 = vmatprep.subr.mxu0 0.0
    %1443 = vmatpush1.msra.mxu0 0.0
    %1444 = vmatprep.subr.mxu0 0.0
    %1445 = vmatpush1.msra.mxu0 0.0
    %1446 = vmatprep.subr.mxu0 0.0
    %1447 = vmatpush1.msra.mxu0 0.0
    %1448 = vmatprep.subr.mxu0 0.0
    %1449 = vmatpush1.msra.mxu0 0.0
    %1450 = vmatprep.subr.mxu0 0.0
    %1451 = vmatpush1.msra.mxu0 0.0
    %1452 = vmatprep.subr.mxu0 0.0
    %1453 = vmatpush1.msra.mxu0 0.0
    %1454 = vmatprep.subr.mxu0 0.0
    %1455 = vmatpush1.msra.mxu0 0.0
    %1456 = vmatprep.subr.mxu0 0.0
    %1457 = vmatpush1.msra.mxu0 0.0
    %1458 = vmatprep.subr.mxu0 0.0
    %1459 = vmatpush1.msra.mxu0 0.0
    %1460 = vmatprep.subr.mxu0 0.0
    %1461 = vmatpush1.msra.mxu0 0.0
    %1462 = vmatprep.subr.mxu0 0.0
    %1463 = vmatpush1.msra.mxu0 0.0
    %1464 = vmatprep.subr.mxu0 0.0
    %1465 = vmatpush1.msra.mxu0 0.0
    %1466 = vmatprep.subr.mxu0 0.0
    %1467 = vmatpush1.msra.mxu0 0.0
    %1468 = vmatprep.mubr.f32.mxu0 0.0
    %1469 = vmatmul.mubr.f32.gmra.mrb[0].mxu0 %v1402
    %v1470 = vpop.f32.mrb[0].mxu0
    %v1471 = vadd.f32 %v104, %v1470
    %v1472 = vpop.f32.mrb[0].mxu0
    %1473 = vdwg.mxu0
    %1474 = vmatprep.subr.mxu0 0.0
    %1475 = vmatpush1.msra.mxu0 %v87
    %1476 = vmatprep.subr.mxu0 0.0
    %1477 = vmatpush1.msra.mxu0 %v88
    %1478 = vmatprep.subr.mxu0 0.0
    %1479 = vmatpush1.msra.mxu0 %v89
    %1480 = vmatprep.subr.mxu0 0.0
    %1481 = vmatpush1.msra.mxu0 %v90
    %1482 = vmatprep.subr.mxu0 0.0
    %1483 = vmatpush1.msra.mxu0 0.0
    %1484 = vmatprep.subr.mxu0 0.0
    %1485 = vmatpush1.msra.mxu0 0.0
    %1486 = vmatprep.subr.mxu0 0.0
    %1487 = vmatpush1.msra.mxu0 0.0
    %1488 = vmatprep.subr.mxu0 0.0
    %1489 = vmatpush1.msra.mxu0 0.0
    %1490 = vmatprep.subr.mxu0 0.0
    %1491 = vmatpush1.msra.mxu0 0.0
    %1492 = vmatprep.subr.mxu0 0.0
    %1493 = vmatpush1.msra.mxu0 0.0
    %1494 = vmatprep.subr.mxu0 0.0
    %1495 = vmatpush1.msra.mxu0 0.0
    %1496 = vmatprep.subr.mxu0 0.0
    %1497 = vmatpush1.msra.mxu0 0.0
    %1498 = vmatprep.subr.mxu0 0.0
    %1499 = vmatpush1.msra.mxu0 0.0
    %1500 = vmatprep.subr.mxu0 0.0
    %1501 = vmatpush1.msra.mxu0 0.0
    %1502 = vmatprep.subr.mxu0 0.0
    %1503 = vmatpush1.msra.mxu0 0.0
    %1504 = vmatprep.subr.mxu0 0.0
    %1505 = vmatpush1.msra.mxu0 0.0
    %1506 = vmatprep.subr.mxu0 0.0
    %1507 = vmatpush1.msra.mxu0 0.0
    %1508 = vmatprep.subr.mxu0 0.0
    %1509 = vmatpush1.msra.mxu0 0.0
    %1510 = vmatprep.subr.mxu0 0.0
    %1511 = vmatpush1.msra.mxu0 0.0
    %1512 = vmatprep.subr.mxu0 0.0
    %1513 = vmatpush1.msra.mxu0 0.0
    %1514 = vmatprep.subr.mxu0 0.0
    %1515 = vmatpush1.msra.mxu0 0.0
    %1516 = vmatprep.subr.mxu0 0.0
    %1517 = vmatpush1.msra.mxu0 0.0
    %1518 = vmatprep.subr.mxu0 0.0
    %1519 = vmatpush1.msra.mxu0 0.0
    %1520 = vmatprep.subr.mxu0 0.0
    %1521 = vmatpush1.msra.mxu0 0.0
    %1522 = vmatprep.subr.mxu0 0.0
    %1523 = vmatpush1.msra.mxu0 0.0
    %1524 = vmatprep.subr.mxu0 0.0
    %1525 = vmatpush1.msra.mxu0 0.0
    %1526 = vmatprep.subr.mxu0 0.0
    %1527 = vmatpush1.msra.mxu0 0.0
    %1528 = vmatprep.subr.mxu0 0.0
    %1529 = vmatpush1.msra.mxu0 0.0
    %1530 = vmatprep.subr.mxu0 0.0
    %1531 = vmatpush1.msra.mxu0 0.0
    %1532 = vmatprep.subr.mxu0 0.0
    %1533 = vmatpush1.msra.mxu0 0.0
    %1534 = vmatprep.subr.mxu0 0.0
    %1535 = vmatpush1.msra.mxu0 0.0
    %1536 = vmatprep.subr.mxu0 0.0
    %1537 = vmatpush1.msra.mxu0 0.0
    %1538 = vmatprep.mubr.f32.mxu0 0.0
    %1539 = vmatmul.mubr.f32.gmra.mrb[0].mxu0 %v1291
    %v1540 = vpop.f32.mrb[0].mxu0
    %v1541 = vadd.f32 0.0, %v1540
    %v1542 = vpop.f32.mrb[0].mxu0
    %1543 = vdwg.mxu0
    %v1544 = vadd.f32 %v1471, %v1541
    %v1545 = vtanh.pop %v1544
    %v1547 = vsel %vm184, %v1545, 0
    %1549 = vmatprep.subr.mxu0 0.0
    %1550 = vmatpush1.msra.mxu0 %v92
    %1551 = vmatprep.subr.mxu0 0.0
    %1552 = vmatpush1.msra.mxu0 %v93
    %1553 = vmatprep.subr.mxu0 0.0
    %1554 = vmatpush1.msra.mxu0 %v94
    %1555 = vmatprep.subr.mxu0 0.0
    %1556 = vmatpush1.msra.mxu0 %v95
    %1557 = vmatprep.subr.mxu0 0.0
    %1558 = vmatpush1.msra.mxu0 0.0
    %1559 = vmatprep.subr.mxu0 0.0
    %1560 = vmatpush1.msra.mxu0 0.0
    %1561 = vmatprep.subr.mxu0 0.0
    %1562 = vmatpush1.msra.mxu0 0.0
    %1563 = vmatprep.subr.mxu0 0.0
    %1564 = vmatpush1.msra.mxu0 0.0
    %1565 = vmatprep.subr.mxu0 0.0
    %1566 = vmatpush1.msra.mxu0 0.0
    %1567 = vmatprep.subr.mxu0 0.0
    %1568 = vmatpush1.msra.mxu0 0.0
    %1569 = vmatprep.subr.mxu0 0.0
    %1570 = vmatpush1.msra.mxu0 0.0
    %1571 = vmatprep.subr.mxu0 0.0
    %1572 = vmatpush1.msra.mxu0 0.0
    %1573 = vmatprep.subr.mxu0 0.0
    %1574 = vmatpush1.msra.mxu0 0.0
    %1575 = vmatprep.subr.mxu0 0.0
    %1576 = vmatpush1.msra.mxu0 0.0
    %1577 = vmatprep.subr.mxu0 0.0
    %1578 = vmatpush1.msra.mxu0 0.0
    %1579 = vmatprep.subr.mxu0 0.0
    %1580 = vmatpush1.msra.mxu0 0.0
    %1581 = vmatprep.subr.mxu0 0.0
    %1582 = vmatpush1.msra.mxu0 0.0
    %1583 = vmatprep.subr.mxu0 0.0
    %1584 = vmatpush1.msra.mxu0 0.0
    %1585 = vmatprep.subr.mxu0 0.0
    %1586 = vmatpush1.msra.mxu0 0.0
    %1587 = vmatprep.subr.mxu0 0.0
    %1588 = vmatpush1.msra.mxu0 0.0
    %1589 = vmatprep.subr.mxu0 0.0
    %1590 = vmatpush1.msra.mxu0 0.0
    %1591 = vmatprep.subr.mxu0 0.0
    %1592 = vmatpush1.msra.mxu0 0.0
    %1593 = vmatprep.subr.mxu0 0.0
    %1594 = vmatpush1.msra.mxu0 0.0
    %1595 = vmatprep.subr.mxu0 0.0
    %1596 = vmatpush1.msra.mxu0 0.0
    %1597 = vmatprep.subr.mxu0 0.0
    %1598 = vmatpush1.msra.mxu0 0.0
    %1599 = vmatprep.subr.mxu0 0.0
    %1600 = vmatpush1.msra.mxu0 0.0
    %1601 = vmatprep.subr.mxu0 0.0
    %1602 = vmatpush1.msra.mxu0 0.0
    %1603 = vmatprep.subr.mxu0 0.0
    %1604 = vmatpush1.msra.mxu0 0.0
    %1605 = vmatprep.subr.mxu0 0.0
    %1606 = vmatpush1.msra.mxu0 0.0
    %1607 = vmatprep.subr.mxu0 0.0
    %1608 = vmatpush1.msra.mxu0 0.0
    %1609 = vmatprep.subr.mxu0 0.0
    %1610 = vmatpush1.msra.mxu0 0.0
    %1611 = vmatprep.subr.mxu0 0.0
    %1612 = vmatpush1.msra.mxu0 0.0
    %1613 = vmatprep.mubr.f32.mxu0 0.0
    %1614 = vmatmul.mubr.f32.gmra.mrb[0].mxu0 %v1547
    %v1615 = vpop.f32.mrb[0].mxu0
    %v1616 = vadd.f32 %v264, %v1615
    %v1617 = vpop.f32.mrb[0].mxu0
    %1618 = vdwg.mxu0
    %v1619 = vxor.u32 %v1616, 2147483648
    %v1620 = vmul.f32 %v1619, 1.442695
    %v1621 = vpow.pop %v1620
    %v1622 = vadd.f32 %v1621, 1.0
    %v1623 = vrcp.pop %v1622
    %v1624 = vmul.f32 1.0, %v1623
    %v1627 = vunpack.c.l.s4 1966171168
    %v1628 = vunpack.c.0.s8 %v1627
    %v1629 = vlaneseq
    %v1630 = vshrl.u32 %v1629, 7
    %v1631 = vsub.s32 %v1628, %v1630
    %v1632 = vrot.slane %v1624, %v1631
    %v1633 = vcombine.high %v1632, %v1632
    %v1635 = vunpack.c.l.s4 1966171168
    %v1636 = vunpack.c.0.s8 %v1635
    %v1637 = vlaneseq
    %v1638 = vshrl.u32 %v1637, 7
    %v1639 = vsub.s32 %v1636, %v1638
    %v1640 = vrot.slane %v1632, %v1639
    %v1642 = vunpack.c.l.s4 1966171168
    %v1643 = vunpack.c.0.s8 %v1642
    %v1644 = vlaneseq
    %v1645 = vshrl.u32 %v1644, 7
    %v1646 = vsub.s32 %v1643, %v1645
    %v1647 = vrot.slane %v1633, %v1646
    %1650 = vst [vmem:[#allocation10 + $0x5] sm:$0x1] %v1640
    %1651 = vst [vmem:[#allocation10 + $0xd] sm:$0x1] %v1647
    %v1652 = vld [vmem:[#allocation2 + $0x6] sm:$0x1]
    %v1653 = vld [vmem:[#allocation2 + $0xe] sm:$0x1]
    %v1656 = vrot.slane %v1653, 7
    %v1657 = vsel %vm109, %v1656, %v1652
    %v1658 = vsel %vm111, %v1657, 0
    %1660 = vmatprep.subr.mxu0 0.0
    %1661 = vmatpush1.msra.mxu0 %v85
    %1662 = vmatprep.subr.mxu0 0.0
    %1663 = vmatpush1.msra.mxu0 %v86
    %1664 = vmatprep.subr.mxu0 0.0
    %1665 = vmatpush1.msra.mxu0 0.0
    %1666 = vmatprep.subr.mxu0 0.0
    %1667 = vmatpush1.msra.mxu0 0.0
    %1668 = vmatprep.subr.mxu0 0.0
    %1669 = vmatpush1.msra.mxu0 0.0
    %1670 = vmatprep.subr.mxu0 0.0
    %1671 = vmatpush1.msra.mxu0 0.0
    %1672 = vmatprep.subr.mxu0 0.0
    %1673 = vmatpush1.msra.mxu0 0.0
    %1674 = vmatprep.subr.mxu0 0.0
    %1675 = vmatpush1.msra.mxu0 0.0
    %1676 = vmatprep.subr.mxu0 0.0
    %1677 = vmatpush1.msra.mxu0 0.0
    %1678 = vmatprep.subr.mxu0 0.0
    %1679 = vmatpush1.msra.mxu0 0.0
    %1680 = vmatprep.subr.mxu0 0.0
    %1681 = vmatpush1.msra.mxu0 0.0
    %1682 = vmatprep.subr.mxu0 0.0
    %1683 = vmatpush1.msra.mxu0 0.0
    %1684 = vmatprep.subr.mxu0 0.0
    %1685 = vmatpush1.msra.mxu0 0.0
    %1686 = vmatprep.subr.mxu0 0.0
    %1687 = vmatpush1.msra.mxu0 0.0
    %1688 = vmatprep.subr.mxu0 0.0
    %1689 = vmatpush1.msra.mxu0 0.0
    %1690 = vmatprep.subr.mxu0 0.0
    %1691 = vmatpush1.msra.mxu0 0.0
    %1692 = vmatprep.subr.mxu0 0.0
    %1693 = vmatpush1.msra.mxu0 0.0
    %1694 = vmatprep.subr.mxu0 0.0
    %1695 = vmatpush1.msra.mxu0 0.0
    %1696 = vmatprep.subr.mxu0 0.0
    %1697 = vmatpush1.msra.mxu0 0.0
    %1698 = vmatprep.subr.mxu0 0.0
    %1699 = vmatpush1.msra.mxu0 0.0
    %1700 = vmatprep.subr.mxu0 0.0
    %1701 = vmatpush1.msra.mxu0 0.0
    %1702 = vmatprep.subr.mxu0 0.0
    %1703 = vmatpush1.msra.mxu0 0.0
    %1704 = vmatprep.subr.mxu0 0.0
    %1705 = vmatpush1.msra.mxu0 0.0
    %1706 = vmatprep.subr.mxu0 0.0
    %1707 = vmatpush1.msra.mxu0 0.0
    %1708 = vmatprep.subr.mxu0 0.0
    %1709 = vmatpush1.msra.mxu0 0.0
    %1710 = vmatprep.subr.mxu0 0.0
    %1711 = vmatpush1.msra.mxu0 0.0
    %1712 = vmatprep.subr.mxu0 0.0
    %1713 = vmatpush1.msra.mxu0 0.0
    %1714 = vmatprep.subr.mxu0 0.0
    %1715 = vmatpush1.msra.mxu0 0.0
    %1716 = vmatprep.subr.mxu0 0.0
    %1717 = vmatpush1.msra.mxu0 0.0
    %1718 = vmatprep.subr.mxu0 0.0
    %1719 = vmatpush1.msra.mxu0 0.0
    %1720 = vmatprep.subr.mxu0 0.0
    %1721 = vmatpush1.msra.mxu0 0.0
    %1722 = vmatprep.subr.mxu0 0.0
    %1723 = vmatpush1.msra.mxu0 0.0
    %1724 = vmatprep.mubr.f32.mxu0 0.0
    %1725 = vmatmul.mubr.f32.gmra.mrb[0].mxu0 %v1658
    %v1726 = vpop.f32.mrb[0].mxu0
    %v1727 = vadd.f32 %v104, %v1726
    %v1728 = vpop.f32.mrb[0].mxu0
    %1729 = vdwg.mxu0
    %1730 = vmatprep.subr.mxu0 0.0
    %1731 = vmatpush1.msra.mxu0 %v87
    %1732 = vmatprep.subr.mxu0 0.0
    %1733 = vmatpush1.msra.mxu0 %v88
    %1734 = vmatprep.subr.mxu0 0.0
    %1735 = vmatpush1.msra.mxu0 %v89
    %1736 = vmatprep.subr.mxu0 0.0
    %1737 = vmatpush1.msra.mxu0 %v90
    %1738 = vmatprep.subr.mxu0 0.0
    %1739 = vmatpush1.msra.mxu0 0.0
    %1740 = vmatprep.subr.mxu0 0.0
    %1741 = vmatpush1.msra.mxu0 0.0
    %1742 = vmatprep.subr.mxu0 0.0
    %1743 = vmatpush1.msra.mxu0 0.0
    %1744 = vmatprep.subr.mxu0 0.0
    %1745 = vmatpush1.msra.mxu0 0.0
    %1746 = vmatprep.subr.mxu0 0.0
    %1747 = vmatpush1.msra.mxu0 0.0
    %1748 = vmatprep.subr.mxu0 0.0
    %1749 = vmatpush1.msra.mxu0 0.0
    %1750 = vmatprep.subr.mxu0 0.0
    %1751 = vmatpush1.msra.mxu0 0.0
    %1752 = vmatprep.subr.mxu0 0.0
    %1753 = vmatpush1.msra.mxu0 0.0
    %1754 = vmatprep.subr.mxu0 0.0
    %1755 = vmatpush1.msra.mxu0 0.0
    %1756 = vmatprep.subr.mxu0 0.0
    %1757 = vmatpush1.msra.mxu0 0.0
    %1758 = vmatprep.subr.mxu0 0.0
    %1759 = vmatpush1.msra.mxu0 0.0
    %1760 = vmatprep.subr.mxu0 0.0
    %1761 = vmatpush1.msra.mxu0 0.0
    %1762 = vmatprep.subr.mxu0 0.0
    %1763 = vmatpush1.msra.mxu0 0.0
    %1764 = vmatprep.subr.mxu0 0.0
    %1765 = vmatpush1.msra.mxu0 0.0
    %1766 = vmatprep.subr.mxu0 0.0
    %1767 = vmatpush1.msra.mxu0 0.0
    %1768 = vmatprep.subr.mxu0 0.0
    %1769 = vmatpush1.msra.mxu0 0.0
    %1770 = vmatprep.subr.mxu0 0.0
    %1771 = vmatpush1.msra.mxu0 0.0
    %1772 = vmatprep.subr.mxu0 0.0
    %1773 = vmatpush1.msra.mxu0 0.0
    %1774 = vmatprep.subr.mxu0 0.0
    %1775 = vmatpush1.msra.mxu0 0.0
    %1776 = vmatprep.subr.mxu0 0.0
    %1777 = vmatpush1.msra.mxu0 0.0
    %1778 = vmatprep.subr.mxu0 0.0
    %1779 = vmatpush1.msra.mxu0 0.0
    %1780 = vmatprep.subr.mxu0 0.0
    %1781 = vmatpush1.msra.mxu0 0.0
    %1782 = vmatprep.subr.mxu0 0.0
    %1783 = vmatpush1.msra.mxu0 0.0
    %1784 = vmatprep.subr.mxu0 0.0
    %1785 = vmatpush1.msra.mxu0 0.0
    %1786 = vmatprep.subr.mxu0 0.0
    %1787 = vmatpush1.msra.mxu0 0.0
    %1788 = vmatprep.subr.mxu0 0.0
    %1789 = vmatpush1.msra.mxu0 0.0
    %1790 = vmatprep.subr.mxu0 0.0
    %1791 = vmatpush1.msra.mxu0 0.0
    %1792 = vmatprep.subr.mxu0 0.0
    %1793 = vmatpush1.msra.mxu0 0.0
    %1794 = vmatprep.mubr.f32.mxu0 0.0
    %1795 = vmatmul.mubr.f32.gmra.mrb[0].mxu0 %v1547
    %v1796 = vpop.f32.mrb[0].mxu0
    %v1797 = vadd.f32 0.0, %v1796
    %v1798 = vpop.f32.mrb[0].mxu0
    %1799 = vdwg.mxu0
    %v1800 = vadd.f32 %v1727, %v1797
    %v1801 = vtanh.pop %v1800
    %v1803 = vsel %vm184, %v1801, 0
    %1805 = vmatprep.subr.mxu0 0.0
    %1806 = vmatpush1.msra.mxu0 %v92
    %1807 = vmatprep.subr.mxu0 0.0
    %1808 = vmatpush1.msra.mxu0 %v93
    %1809 = vmatprep.subr.mxu0 0.0
    %1810 = vmatpush1.msra.mxu0 %v94
    %1811 = vmatprep.subr.mxu0 0.0
    %1812 = vmatpush1.msra.mxu0 %v95
    %1813 = vmatprep.subr.mxu0 0.0
    %1814 = vmatpush1.msra.mxu0 0.0
    %1815 = vmatprep.subr.mxu0 0.0
    %1816 = vmatpush1.msra.mxu0 0.0
    %1817 = vmatprep.subr.mxu0 0.0
    %1818 = vmatpush1.msra.mxu0 0.0
    %1819 = vmatprep.subr.mxu0 0.0
    %1820 = vmatpush1.msra.mxu0 0.0
    %1821 = vmatprep.subr.mxu0 0.0
    %1822 = vmatpush1.msra.mxu0 0.0
    %1823 = vmatprep.subr.mxu0 0.0
    %1824 = vmatpush1.msra.mxu0 0.0
    %1825 = vmatprep.subr.mxu0 0.0
    %1826 = vmatpush1.msra.mxu0 0.0
    %1827 = vmatprep.subr.mxu0 0.0
    %1828 = vmatpush1.msra.mxu0 0.0
    %1829 = vmatprep.subr.mxu0 0.0
    %1830 = vmatpush1.msra.mxu0 0.0
    %1831 = vmatprep.subr.mxu0 0.0
    %1832 = vmatpush1.msra.mxu0 0.0
    %1833 = vmatprep.subr.mxu0 0.0
    %1834 = vmatpush1.msra.mxu0 0.0
    %1835 = vmatprep.subr.mxu0 0.0
    %1836 = vmatpush1.msra.mxu0 0.0
    %1837 = vmatprep.subr.mxu0 0.0
    %1838 = vmatpush1.msra.mxu0 0.0
    %1839 = vmatprep.subr.mxu0 0.0
    %1840 = vmatpush1.msra.mxu0 0.0
    %1841 = vmatprep.subr.mxu0 0.0
    %1842 = vmatpush1.msra.mxu0 0.0
    %1843 = vmatprep.subr.mxu0 0.0
    %1844 = vmatpush1.msra.mxu0 0.0
    %1845 = vmatprep.subr.mxu0 0.0
    %1846 = vmatpush1.msra.mxu0 0.0
    %1847 = vmatprep.subr.mxu0 0.0
    %1848 = vmatpush1.msra.mxu0 0.0
    %1849 = vmatprep.subr.mxu0 0.0
    %1850 = vmatpush1.msra.mxu0 0.0
    %1851 = vmatprep.subr.mxu0 0.0
    %1852 = vmatpush1.msra.mxu0 0.0
    %1853 = vmatprep.subr.mxu0 0.0
    %1854 = vmatpush1.msra.mxu0 0.0
    %1855 = vmatprep.subr.mxu0 0.0
    %1856 = vmatpush1.msra.mxu0 0.0
    %1857 = vmatprep.subr.mxu0 0.0
    %1858 = vmatpush1.msra.mxu0 0.0
    %1859 = vmatprep.subr.mxu0 0.0
    %1860 = vmatpush1.msra.mxu0 0.0
    %1861 = vmatprep.subr.mxu0 0.0
    %1862 = vmatpush1.msra.mxu0 0.0
    %1863 = vmatprep.subr.mxu0 0.0
    %1864 = vmatpush1.msra.mxu0 0.0
    %1865 = vmatprep.subr.mxu0 0.0
    %1866 = vmatpush1.msra.mxu0 0.0
    %1867 = vmatprep.subr.mxu0 0.0
    %1868 = vmatpush1.msra.mxu0 0.0
    %1869 = vmatprep.mubr.f32.mxu0 0.0
    %1870 = vmatmul.mubr.f32.gmra.mrb[0].mxu0 %v1803
    %v1871 = vpop.f32.mrb[0].mxu0
    %v1872 = vadd.f32 %v264, %v1871
    %v1873 = vpop.f32.mrb[0].mxu0
    %1874 = vdwg.mxu0
    %v1875 = vxor.u32 %v1872, 2147483648
    %v1876 = vmul.f32 %v1875, 1.442695
    %v1877 = vpow.pop %v1876
    %v1878 = vadd.f32 %v1877, 1.0
    %v1879 = vrcp.pop %v1878
    %v1880 = vmul.f32 1.0, %v1879
    %v1883 = vunpack.c.l.s4 1966171168
    %v1884 = vunpack.c.0.s8 %v1883
    %v1885 = vlaneseq
    %v1886 = vshrl.u32 %v1885, 7
    %v1887 = vsub.s32 %v1884, %v1886
    %v1888 = vrot.slane %v1880, %v1887
    %v1889 = vcombine.high %v1888, %v1888
    %v1891 = vunpack.c.l.s4 1966171168
    %v1892 = vunpack.c.0.s8 %v1891
    %v1893 = vlaneseq
    %v1894 = vshrl.u32 %v1893, 7
    %v1895 = vsub.s32 %v1892, %v1894
    %v1896 = vrot.slane %v1888, %v1895
    %v1898 = vunpack.c.l.s4 1966171168
    %v1899 = vunpack.c.0.s8 %v1898
    %v1900 = vlaneseq
    %v1901 = vshrl.u32 %v1900, 7
    %v1902 = vsub.s32 %v1899, %v1901
    %v1903 = vrot.slane %v1889, %v1902
    %1906 = vst [vmem:[#allocation10 + $0x6] sm:$0x1] %v1896
    %1907 = vst [vmem:[#allocation10 + $0xe] sm:$0x1] %v1903
    %v1908 = vld [vmem:[#allocation2 + $0x7] sm:$0x1]
    %v1909 = vld [vmem:[#allocation2 + $0xf] sm:$0x1]
    %v1912 = vrot.slane %v1909, 7
    %v1913 = vsel %vm109, %v1912, %v1908
    %v1914 = vsel %vm111, %v1913, 0
    %1916 = vmatprep.subr.mxu0 0.0
    %1917 = vmatpush1.msra.mxu0 %v85
    %1918 = vmatprep.subr.mxu0 0.0
    %1919 = vmatpush1.msra.mxu0 %v86
    %1920 = vmatprep.subr.mxu0 0.0
    %1921 = vmatpush1.msra.mxu0 0.0
    %1922 = vmatprep.subr.mxu0 0.0
    %1923 = vmatpush1.msra.mxu0 0.0
    %1924 = vmatprep.subr.mxu0 0.0
    %1925 = vmatpush1.msra.mxu0 0.0
    %1926 = vmatprep.subr.mxu0 0.0
    %1927 = vmatpush1.msra.mxu0 0.0
    %1928 = vmatprep.subr.mxu0 0.0
    %1929 = vmatpush1.msra.mxu0 0.0
    %1930 = vmatprep.subr.mxu0 0.0
    %1931 = vmatpush1.msra.mxu0 0.0
    %1932 = vmatprep.subr.mxu0 0.0
    %1933 = vmatpush1.msra.mxu0 0.0
    %1934 = vmatprep.subr.mxu0 0.0
    %1935 = vmatpush1.msra.mxu0 0.0
    %1936 = vmatprep.subr.mxu0 0.0
    %1937 = vmatpush1.msra.mxu0 0.0
    %1938 = vmatprep.subr.mxu0 0.0
    %1939 = vmatpush1.msra.mxu0 0.0
    %1940 = vmatprep.subr.mxu0 0.0
    %1941 = vmatpush1.msra.mxu0 0.0
    %1942 = vmatprep.subr.mxu0 0.0
    %1943 = vmatpush1.msra.mxu0 0.0
    %1944 = vmatprep.subr.mxu0 0.0
    %1945 = vmatpush1.msra.mxu0 0.0
    %1946 = vmatprep.subr.mxu0 0.0
    %1947 = vmatpush1.msra.mxu0 0.0
    %1948 = vmatprep.subr.mxu0 0.0
    %1949 = vmatpush1.msra.mxu0 0.0
    %1950 = vmatprep.subr.mxu0 0.0
    %1951 = vmatpush1.msra.mxu0 0.0
    %1952 = vmatprep.subr.mxu0 0.0
    %1953 = vmatpush1.msra.mxu0 0.0
    %1954 = vmatprep.subr.mxu0 0.0
    %1955 = vmatpush1.msra.mxu0 0.0
    %1956 = vmatprep.subr.mxu0 0.0
    %1957 = vmatpush1.msra.mxu0 0.0
    %1958 = vmatprep.subr.mxu0 0.0
    %1959 = vmatpush1.msra.mxu0 0.0
    %1960 = vmatprep.subr.mxu0 0.0
    %1961 = vmatpush1.msra.mxu0 0.0
    %1962 = vmatprep.subr.mxu0 0.0
    %1963 = vmatpush1.msra.mxu0 0.0
    %1964 = vmatprep.subr.mxu0 0.0
    %1965 = vmatpush1.msra.mxu0 0.0
    %1966 = vmatprep.subr.mxu0 0.0
    %1967 = vmatpush1.msra.mxu0 0.0
    %1968 = vmatprep.subr.mxu0 0.0
    %1969 = vmatpush1.msra.mxu0 0.0
    %1970 = vmatprep.subr.mxu0 0.0
    %1971 = vmatpush1.msra.mxu0 0.0
    %1972 = vmatprep.subr.mxu0 0.0
    %1973 = vmatpush1.msra.mxu0 0.0
    %1974 = vmatprep.subr.mxu0 0.0
    %1975 = vmatpush1.msra.mxu0 0.0
    %1976 = vmatprep.subr.mxu0 0.0
    %1977 = vmatpush1.msra.mxu0 0.0
    %1978 = vmatprep.subr.mxu0 0.0
    %1979 = vmatpush1.msra.mxu0 0.0
    %1980 = vmatprep.mubr.f32.mxu0 0.0
    %1981 = vmatmul.mubr.f32.gmra.mrb[0].mxu0 %v1914
    %v1982 = vpop.f32.mrb[0].mxu0
    %v1983 = vadd.f32 %v104, %v1982
    %v1984 = vpop.f32.mrb[0].mxu0
    %1985 = vdwg.mxu0
    %1986 = vmatprep.subr.mxu0 0.0
    %1987 = vmatpush1.msra.mxu0 %v87
    %1988 = vmatprep.subr.mxu0 0.0
    %1989 = vmatpush1.msra.mxu0 %v88
    %1990 = vmatprep.subr.mxu0 0.0
    %1991 = vmatpush1.msra.mxu0 %v89
    %1992 = vmatprep.subr.mxu0 0.0
    %1993 = vmatpush1.msra.mxu0 %v90
    %1994 = vmatprep.subr.mxu0 0.0
    %1995 = vmatpush1.msra.mxu0 0.0
    %1996 = vmatprep.subr.mxu0 0.0
    %1997 = vmatpush1.msra.mxu0 0.0
    %1998 = vmatprep.subr.mxu0 0.0
    %1999 = vmatpush1.msra.mxu0 0.0
    %2000 = vmatprep.subr.mxu0 0.0
    %2001 = vmatpush1.msra.mxu0 0.0
    %2002 = vmatprep.subr.mxu0 0.0
    %2003 = vmatpush1.msra.mxu0 0.0
    %2004 = vmatprep.subr.mxu0 0.0
    %2005 = vmatpush1.msra.mxu0 0.0
    %2006 = vmatprep.subr.mxu0 0.0
    %2007 = vmatpush1.msra.mxu0 0.0
    %2008 = vmatprep.subr.mxu0 0.0
    %2009 = vmatpush1.msra.mxu0 0.0
    %2010 = vmatprep.subr.mxu0 0.0
    %2011 = vmatpush1.msra.mxu0 0.0
    %2012 = vmatprep.subr.mxu0 0.0
    %2013 = vmatpush1.msra.mxu0 0.0
    %2014 = vmatprep.subr.mxu0 0.0
    %2015 = vmatpush1.msra.mxu0 0.0
    %2016 = vmatprep.subr.mxu0 0.0
    %2017 = vmatpush1.msra.mxu0 0.0
    %2018 = vmatprep.subr.mxu0 0.0
    %2019 = vmatpush1.msra.mxu0 0.0
    %2020 = vmatprep.subr.mxu0 0.0
    %2021 = vmatpush1.msra.mxu0 0.0
    %2022 = vmatprep.subr.mxu0 0.0
    %2023 = vmatpush1.msra.mxu0 0.0
    %2024 = vmatprep.subr.mxu0 0.0
    %2025 = vmatpush1.msra.mxu0 0.0
    %2026 = vmatprep.subr.mxu0 0.0
    %2027 = vmatpush1.msra.mxu0 0.0
    %2028 = vmatprep.subr.mxu0 0.0
    %2029 = vmatpush1.msra.mxu0 0.0
    %2030 = vmatprep.subr.mxu0 0.0
    %2031 = vmatpush1.msra.mxu0 0.0
    %2032 = vmatprep.subr.mxu0 0.0
    %2033 = vmatpush1.msra.mxu0 0.0
    %2034 = vmatprep.subr.mxu0 0.0
    %2035 = vmatpush1.msra.mxu0 0.0
    %2036 = vmatprep.subr.mxu0 0.0
    %2037 = vmatpush1.msra.mxu0 0.0
    %2038 = vmatprep.subr.mxu0 0.0
    %2039 = vmatpush1.msra.mxu0 0.0
    %2040 = vmatprep.subr.mxu0 0.0
    %2041 = vmatpush1.msra.mxu0 0.0
    %2042 = vmatprep.subr.mxu0 0.0
    %2043 = vmatpush1.msra.mxu0 0.0
    %2044 = vmatprep.subr.mxu0 0.0
    %2045 = vmatpush1.msra.mxu0 0.0
    %2046 = vmatprep.subr.mxu0 0.0
    %2047 = vmatpush1.msra.mxu0 0.0
    %2048 = vmatprep.subr.mxu0 0.0
    %2049 = vmatpush1.msra.mxu0 0.0
    %2050 = vmatprep.mubr.f32.mxu0 0.0
    %2051 = vmatmul.mubr.f32.gmra.mrb[0].mxu0 %v1803
    %v2052 = vpop.f32.mrb[0].mxu0
    %v2053 = vadd.f32 0.0, %v2052
    %v2054 = vpop.f32.mrb[0].mxu0
    %2055 = vdwg.mxu0
    %v2056 = vadd.f32 %v1983, %v2053
    %v2057 = vtanh.pop %v2056
    %v2059 = vsel %vm184, %v2057, 0
    %2061 = vmatprep.subr.mxu0 0.0
    %2062 = vmatpush1.msra.mxu0 %v92
    %2063 = vmatprep.subr.mxu0 0.0
    %2064 = vmatpush1.msra.mxu0 %v93
    %2065 = vmatprep.subr.mxu0 0.0
    %2066 = vmatpush1.msra.mxu0 %v94
    %2067 = vmatprep.subr.mxu0 0.0
    %2068 = vmatpush1.msra.mxu0 %v95
    %2069 = vmatprep.subr.mxu0 0.0
    %2070 = vmatpush1.msra.mxu0 0.0
    %2071 = vmatprep.subr.mxu0 0.0
    %2072 = vmatpush1.msra.mxu0 0.0
    %2073 = vmatprep.subr.mxu0 0.0
    %2074 = vmatpush1.msra.mxu0 0.0
    %2075 = vmatprep.subr.mxu0 0.0
    %2076 = vmatpush1.msra.mxu0 0.0
    %2077 = vmatprep.subr.mxu0 0.0
    %2078 = vmatpush1.msra.mxu0 0.0
    %2079 = vmatprep.subr.mxu0 0.0
    %2080 = vmatpush1.msra.mxu0 0.0
    %2081 = vmatprep.subr.mxu0 0.0
    %2082 = vmatpush1.msra.mxu0 0.0
    %2083 = vmatprep.subr.mxu0 0.0
    %2084 = vmatpush1.msra.mxu0 0.0
    %2085 = vmatprep.subr.mxu0 0.0
    %2086 = vmatpush1.msra.mxu0 0.0
    %2087 = vmatprep.subr.mxu0 0.0
    %2088 = vmatpush1.msra.mxu0 0.0
    %2089 = vmatprep.subr.mxu0 0.0
    %2090 = vmatpush1.msra.mxu0 0.0
    %2091 = vmatprep.subr.mxu0 0.0
    %2092 = vmatpush1.msra.mxu0 0.0
    %2093 = vmatprep.subr.mxu0 0.0
    %2094 = vmatpush1.msra.mxu0 0.0
    %2095 = vmatprep.subr.mxu0 0.0
    %2096 = vmatpush1.msra.mxu0 0.0
    %2097 = vmatprep.subr.mxu0 0.0
    %2098 = vmatpush1.msra.mxu0 0.0
    %2099 = vmatprep.subr.mxu0 0.0
    %2100 = vmatpush1.msra.mxu0 0.0
    %2101 = vmatprep.subr.mxu0 0.0
    %2102 = vmatpush1.msra.mxu0 0.0
    %2103 = vmatprep.subr.mxu0 0.0
    %2104 = vmatpush1.msra.mxu0 0.0
    %2105 = vmatprep.subr.mxu0 0.0
    %2106 = vmatpush1.msra.mxu0 0.0
    %2107 = vmatprep.subr.mxu0 0.0
    %2108 = vmatpush1.msra.mxu0 0.0
    %2109 = vmatprep.subr.mxu0 0.0
    %2110 = vmatpush1.msra.mxu0 0.0
    %2111 = vmatprep.subr.mxu0 0.0
    %2112 = vmatpush1.msra.mxu0 0.0
    %2113 = vmatprep.subr.mxu0 0.0
    %2114 = vmatpush1.msra.mxu0 0.0
    %2115 = vmatprep.subr.mxu0 0.0
    %2116 = vmatpush1.msra.mxu0 0.0
    %2117 = vmatprep.subr.mxu0 0.0
    %2118 = vmatpush1.msra.mxu0 0.0
    %2119 = vmatprep.subr.mxu0 0.0
    %2120 = vmatpush1.msra.mxu0 0.0
    %2121 = vmatprep.subr.mxu0 0.0
    %2122 = vmatpush1.msra.mxu0 0.0
    %2123 = vmatprep.subr.mxu0 0.0
    %2124 = vmatpush1.msra.mxu0 0.0
    %2125 = vmatprep.mubr.f32.mxu0 0.0
    %2126 = vmatmul.mubr.f32.gmra.mrb[0].mxu0 %v2059
    %v2127 = vpop.f32.mrb[0].mxu0
    %v2128 = vadd.f32 %v264, %v2127
    %v2129 = vpop.f32.mrb[0].mxu0
    %2130 = vdwg.mxu0
    %v2131 = vxor.u32 %v2128, 2147483648
    %v2132 = vmul.f32 %v2131, 1.442695
    %v2133 = vpow.pop %v2132
    %v2134 = vadd.f32 %v2133, 1.0
    %v2135 = vrcp.pop %v2134
    %v2136 = vmul.f32 1.0, %v2135
    %v2139 = vunpack.c.l.s4 1966171168
    %v2140 = vunpack.c.0.s8 %v2139
    %v2141 = vlaneseq
    %v2142 = vshrl.u32 %v2141, 7
    %v2143 = vsub.s32 %v2140, %v2142
    %v2144 = vrot.slane %v2136, %v2143
    %v2145 = vcombine.high %v2144, %v2144
    %v2147 = vunpack.c.l.s4 1966171168
    %v2148 = vunpack.c.0.s8 %v2147
    %v2149 = vlaneseq
    %v2150 = vshrl.u32 %v2149, 7
    %v2151 = vsub.s32 %v2148, %v2150
    %v2152 = vrot.slane %v2144, %v2151
    %v2154 = vunpack.c.l.s4 1966171168
    %v2155 = vunpack.c.0.s8 %v2154
    %v2156 = vlaneseq
    %v2157 = vshrl.u32 %v2156, 7
    %v2158 = vsub.s32 %v2155, %v2157
    %v2159 = vrot.slane %v2145, %v2158
    %2162 = vst [vmem:[#allocation10 + $0x7] sm:$0x1] %v2152
    %2163 = vst [vmem:[#allocation10 + $0xf] sm:$0x1] %v2159
    %vm2164 = vcmask 254976
    %2165 = vst.msk [vmem:[#allocation11] sm:$0x3] %vm2164, %v2057
    // Predicated region
    $region46: #{tpu_custom_call.1} parent=1 // pred_check
      _
    $region47: #{tpu_custom_call.1} parent=1 // pred_check_branch
      %2167 = sbr.rel (0) target = $region49
    $region48: #{tpu_custom_call.1} parent=1 // pred_region
      %s2169 = ssub.s32 256, 256
      %2170 = vsyncadd [#allocation4], %s2169
      %s2171 = sshll.u32 [#allocation10], 4
      %s2172 = int_to_ptr.vmem [resolvable:$true] %s2171
      %2177 = dma.vmem_to_hbm [thread:$0]  %s2172, 256, %s7, [#allocation4], 128, 128, 8
    $region49: #{tpu_custom_call.1} parent=1 // pred_fallthru
      _
    // Predicated region
    $region50: #{tpu_custom_call.1} parent=1 // pred_check
      _
    $region51: #{tpu_custom_call.1} parent=1 // pred_check_branch
      %2179 = sbr.rel (0) target = $region53
    $region52: #{tpu_custom_call.1} parent=1 // pred_region
      %s2181 = ssub.s32 32, 32
      %2182 = vsyncadd [#allocation12], %s2181
      %s2184 = sshll.u32 [#allocation11], 4
      %s2185 = int_to_ptr.vmem [resolvable:$true] %s2184
      %2187 = dma.vmem_to_hbm [thread:$0]  %s2185, 32, %s8, [#allocation12]
    $region53: #{tpu_custom_call.1} parent=1 // pred_fallthru
      _
    // Predicated region
    $region54: #{tpu_custom_call.1} parent=1 // pred_check
      _
    $region55: #{tpu_custom_call.1} parent=1 // pred_check_branch
      %2189 = sbr.rel (0) target = $region57
    $region56: #{tpu_custom_call.1} parent=1 // pred_region
      %2190 = dma.done [#allocation4], 256
    $region57: #{tpu_custom_call.1} parent=1 // pred_fallthru
      _
    // Predicated region
    $region58: #{tpu_custom_call.1} parent=1 // pred_check
      _
    $region59: #{tpu_custom_call.1} parent=1 // pred_check_branch
      %2192 = sbr.rel (0) target = $region61
    $region60: #{tpu_custom_call.1} parent=1 // pred_region
      %2193 = dma.done [#allocation12], 32
    $region61: #{tpu_custom_call.1} parent=1 // pred_fallthru
      _
    %2194 = vsyncpa [#allocation3], 1
    %2195 = vsyncpa [#allocation6], 1
    %2196 = vsyncpa [#allocation9], 1
    %2197 = vsyncpa [#allocation4], 1
    %2198 = vsyncpa [#allocation12], 1

</llo_original>
